<compile_context>
chip_gen: v7x
topology: tpu7x:2x2x1
jax: 0.10.0
libtpu: 0.0.40
codegen_flags: <defaults>
</compile_context>

<pallas_src>
import functools

import jax
import jax.numpy as jnp
from jax.experimental import pallas as pl
from jax.experimental.pallas import tpu as pltpu


# ---------------------------------------------------------------------------
# Fused kernel: one grid step == B_TILE batch elements, all heads batched
# ---------------------------------------------------------------------------
def _fused_attention_kernel(x_ref, wqkv_ref, wout_ref, bout_ref, o_ref, ctx_scr,
                            *, heads, dim_head, approx_recip):
    """
    x_ref    : (bt, n, dim)      activation block (compute dtype)
    wqkv_ref : (dim, 3*inner)    resident across the grid (constant index_map)
               -- softmax scale is pre-folded into its q-columns
    wout_ref : (inner, dim)      resident across the grid
    bout_ref : (1, dim)          f32 bias
    o_ref    : (bt, n, dim)      output block
    ctx_scr  : (bt*n, inner)     VMEM scratch for the assembled context slab
    """
    bt, n, dim = x_ref.shape
    inner = heads * dim_head
    rows = bt * n
    cdt = wqkv_ref.dtype                      # MXU operand dtype (f32 or bf16)

    # --- QKV projection: one MXU matmul over all bt*n rows, f32 accumulation
    x2d = x_ref[...].reshape(rows, dim)
    qkv = jnp.dot(x2d, wqkv_ref[...],
                  preferred_element_type=jnp.float32)            # (rows, 3*inner)
    qkv = qkv.astype(cdt)                     # operand dtype for q@k^T / attn@v

    # --- re-layout heads into a leading batch axis: (G, n, d), G = heads*bt
    # (static slices + leading-axis concat only -- pure data movement; the
    #  matmuls below are batched, so no K=8 / N=8 MXU ops remain)
    def heads_to_batch(col0):
        return jnp.concatenate(
            [qkv[:, col0 + h * dim_head: col0 + (h + 1) * dim_head]
             .reshape(bt, n, dim_head) for h in range(heads)],
            axis=0)                                              # (heads*bt, n, d)

    q3 = heads_to_batch(0)              # scale already folded into Wqkv q-cols
    k3 = heads_to_batch(inner)
    v3 = heads_to_batch(2 * inner)

    # --- batched attention scores + softmax (f32 statistics) ----------------
    dots = jnp.einsum("gid,gjd->gij", q3, k3,
                      preferred_element_type=jnp.float32)        # (G, n, n)
    dots = dots - jnp.max(dots, axis=-1, keepdims=True)
    e = jnp.exp(dots)
    denom = jnp.sum(e, axis=-1, keepdims=True)
    attn = e * pl.reciprocal(denom, approx=approx_recip)

    ctx = jnp.einsum("gij,gjd->gid", attn.astype(cdt), v3,
                     preferred_element_type=jnp.float32)         # (G, n, d)

    # --- assemble (rows, inner) context slab head-by-head into VMEM scratch
    # (static lane offsets; avoids an unaligned minor-dim concatenate)
    for h in range(heads):
        ctx_scr[:, h * dim_head:(h + 1) * dim_head] = (
            ctx[h * bt:(h + 1) * bt].reshape(rows, dim_head).astype(ctx_scr.dtype))

    # --- single output projection matmul (K = inner) + bias -----------------
    out = jnp.dot(ctx_scr[...], wout_ref[...],
                  preferred_element_type=jnp.float32)            # (rows, dim)
    out = out + bout_ref[...].astype(jnp.float32)
    o_ref[...] = out.reshape(bt, n, dim).astype(o_ref.dtype)


# ---------------------------------------------------------------------------
# Wrapper
# ---------------------------------------------------------------------------
def attention_forward(x, params, *, heads, dim_head, compute_dtype=None,
                      approx_recip=False, batch_tile=None):
    """x: (b, n, dim) -> (b, n, dim).  Single fused pallas_call.

    compute_dtype: if set (jnp.bfloat16 recommended on v5e/v6e/v7x), all four
    matmuls run with bf16 MXU operands; accumulation and softmax statistics
    stay f32 and the result is returned in x's original dtype.
    """
    b, n, dim = x.shape
    inner = heads * dim_head
    scale = dim_head ** (-0.5)
    out_dtype = x.dtype

    w_qkv = jnp.asarray(params["w_qkv"])      # (dim, 3*inner), JAX (in, out)
    w_out = jnp.asarray(params["w_out"])      # (inner, dim)
    b_out = jnp.asarray(params["b_out"]).reshape(1, dim).astype(jnp.float32)

    # Fold the softmax scale into the q-columns of Wqkv (zero kernel cost).
    w_qkv = w_qkv.at[:, :inner].multiply(scale)

    if compute_dtype is not None:
        x = x.astype(compute_dtype)
        w_qkv = w_qkv.astype(compute_dtype)
        w_out = w_out.astype(compute_dtype)
    cdt = x.dtype

    # --- generation-aware VMEM budget (v5e/v6e: 128 MiB, v7x: 64 MiB per TC)
    try:
        vmem_cap = int(pltpu.get_tpu_info().vmem_capacity_bytes)
    except Exception:
        vmem_cap = 64 * 1024 * 1024
    vmem_budget = int(0.75 * vmem_cap)

    bpe_c = jnp.dtype(cdt).itemsize
    bpe_o = jnp.dtype(out_dtype).itemsize

    def vmem_estimate(bt):
        rows = bt * n
        g = bt * heads
        blk = 2 * rows * dim * (bpe_c + bpe_o)            # x & out blocks, 2x buffered
        wts = 2 * (3 * dim * inner + inner * dim) * bpe_c + 2 * dim * 4
        mid = rows * 3 * inner * (4 + bpe_c)              # qkv f32 + cast
        mid += 3 * g * n * dim_head * bpe_c               # q3 / k3 / v3
        mid += 3 * g * n * n * 4                          # dots / e / attn (f32)
        mid += g * n * n * bpe_c                          # attn cast
        mid += g * n * dim_head * 4                       # ctx (f32)
        mid += rows * inner * bpe_c                       # ctx scratch
        mid += rows * dim * 4                             # out f32
        return blk + wts + mid

    if batch_tile is None:
        bt = max(1, min(b, pl.cdiv(512, n)))              # target ~512 MXU rows/step
        while bt > 1 and vmem_estimate(bt) > vmem_budget:
            bt = max(1, bt // 2)
    else:
        bt = max(1, min(int(batch_tile), b))

    grid = (pl.cdiv(b, bt),)

    kernel = functools.partial(
        _fused_attention_kernel,
        heads=heads, dim_head=dim_head, approx_recip=approx_recip)

    return pl.pallas_call(
        kernel,
        out_shape=jax.ShapeDtypeStruct((b, n, dim), out_dtype),
        grid=grid,
        in_specs=[
            pl.BlockSpec((bt, n, dim), lambda i: (i, 0, 0)),
            pl.BlockSpec((dim, 3 * inner), lambda i: (0, 0)),   # grid-resident
            pl.BlockSpec((inner, dim), lambda i: (0, 0)),       # grid-resident
            pl.BlockSpec((1, dim), lambda i: (0, 0)),           # grid-resident
        ],
        out_specs=pl.BlockSpec((bt, n, dim), lambda i: (i, 0, 0)),
        scratch_shapes=[pltpu.VMEM((bt * n, inner), cdt)],
        compiler_params=pltpu.CompilerParams(
            dimension_semantics=("parallel",),
            vmem_limit_bytes=vmem_budget,
        ),
    )(x, w_qkv, w_out, b_out)


# ---------------------------------------------------------------------------
# Pure-JAX reference for verification
# ---------------------------------------------------------------------------
def attention_ref(x, params, *, heads, dim_head):
    b, n, dim = x.shape
    inner = heads * dim_head
    scale = dim_head ** (-0.5)
    qkv = x @ params["w_qkv"]
    q, k, v = jnp.split(qkv, 3, axis=-1)

    def to_heads(t):
        return t.reshape(b, n, heads, dim_head).transpose(0, 2, 1, 3)

    q, k, v = to_heads(q), to_heads(k), to_heads(v)
    dots = jnp.einsum("bhid,bhjd->bhij", q, k) * scale
    attn = jax.nn.softmax(dots, axis=-1)
    out = jnp.einsum("bhij,bhjd->bhid", attn, v)
    out = out.transpose(0, 2, 1, 3).reshape(b, n, inner)
    return out @ params["w_out"] + params["b_out"]


if __name__ == "__main__":
    # Small shapes consistent with the module
    batch, seq, dim = 2, 8, 32
    heads, dim_head = 4, 8
    inner = heads * dim_head

    key = jax.random.PRNGKey(0)
    k_x, k_wqkv, k_wout, k_bout = jax.random.split(key, 4)

    x = jax.random.normal(k_x, (batch, seq, dim), dtype=jnp.float32)
    params = {
        # JAX convention (in, out) == torch Linear.weight.T
        "w_qkv": jax.random.normal(k_wqkv, (dim, 3 * inner), jnp.float32) * 0.05,
        "w_out": jax.random.normal(k_wout, (inner, dim), jnp.float32) * 0.05,
        "b_out": jax.random.normal(k_bout, (dim,), jnp.float32) * 0.05,
    }

    ref = attention_ref(x, params, heads=heads, dim_head=dim_head)

    # f32 path (exact reciprocal) -- tight tolerance
    out = attention_forward(x, params, heads=heads, dim_head=dim_head)
    out = jax.block_until_ready(out)
    assert out.shape == (batch, seq, dim)
    assert jnp.allclose(out, ref, atol=1e-4, rtol=1e-4), "f32 mismatch vs reference"

    # bf16 MXU-operand path (all four matmuls) -- loose tolerance
    out_bf16 = attention_forward(
        x, params, heads=heads, dim_head=dim_head,
        compute_dtype=jnp.bfloat16, approx_recip=True)
    out_bf16 = jax.block_until_ready(out_bf16)
    assert out_bf16.dtype == jnp.float32
    assert jnp.allclose(out_bf16, ref, atol=5e-2, rtol=5e-2), "bf16 mismatch vs reference"

    print("KERNEL_OK")
</pallas_src>

<mosaic_0001>
module attributes {stable_mosaic.version = 11 : i64} {
  func.func @_fused_attention_kernel(%arg0: i32, %arg1: memref<2x8x32xf32, #tpu.memory_space<vmem>>, %arg2: memref<32x96xf32, #tpu.memory_space<vmem>>, %arg3: memref<32x32xf32, #tpu.memory_space<vmem>>, %arg4: memref<1x32xf32, #tpu.memory_space<vmem>>, %arg5: memref<2x8x32xf32, #tpu.memory_space<vmem>>, %arg6: memref<16x32xf32, #tpu.memory_space<vmem>>) attributes {dimension_semantics = [#tpu.dimension_semantics<parallel>], iteration_bounds = array<i64: 1>, scalar_prefetch = 0 : i64, scratch_operands = 1 : i64, tpu.core_type = #tpu.core_type<tc>, window_params = [{transform_indices = @transform_0, window_bounds = array<i64: 2, 8, 32>}, {pipeline_mode = #tpu.pipeline_mode<synchronous>, transform_indices = @transform_1, window_bounds = array<i64: 32, 96>}, {pipeline_mode = #tpu.pipeline_mode<synchronous>, transform_indices = @transform_2, window_bounds = array<i64: 32, 32>}, {pipeline_mode = #tpu.pipeline_mode<synchronous>, transform_indices = @transform_3, window_bounds = array<i64: 1, 32>}, {transform_indices = @transform_4, window_bounds = array<i64: 2, 8, 32>}]} {
    %c0 = arith.constant 0 : index
    %c0_0 = arith.constant 0 : index
    %c0_1 = arith.constant 0 : index
    %0 = vector.load %arg1[%c0, %c0_0, %c0_1] : memref<2x8x32xf32, #tpu.memory_space<vmem>>, vector<2x8x32xf32>
    %1 = vector.shape_cast %0 : vector<2x8x32xf32> to vector<16x32xf32>
    %c0_2 = arith.constant 0 : index
    %c0_3 = arith.constant 0 : index
    %2 = vector.load %arg2[%c0_2, %c0_3] : memref<32x96xf32, #tpu.memory_space<vmem>>, vector<32x96xf32>
    %cst = arith.constant dense<0.000000e+00> : vector<16x96xf32>
    %3 = tpu.matmul %1, %2, %cst {dimension_numbers = #tpu.dot_dimension_numbers<[1], [0], [0], [1], [0, 0, 1, 1], [], []>} : vector<16x32xf32>, vector<32x96xf32>, vector<16x96xf32> -> vector<16x96xf32>
    %4 = vector.extract_strided_slice %3 {offsets = [0, 0], sizes = [16, 8], strides = [1, 1]} : vector<16x96xf32> to vector<16x8xf32>
    %5 = vector.shape_cast %4 : vector<16x8xf32> to vector<2x8x8xf32>
    %6 = vector.extract_strided_slice %3 {offsets = [0, 8], sizes = [16, 8], strides = [1, 1]} : vector<16x96xf32> to vector<16x8xf32>
    %7 = vector.shape_cast %6 : vector<16x8xf32> to vector<2x8x8xf32>
    %8 = vector.extract_strided_slice %3 {offsets = [0, 16], sizes = [16, 8], strides = [1, 1]} : vector<16x96xf32> to vector<16x8xf32>
    %9 = vector.shape_cast %8 : vector<16x8xf32> to vector<2x8x8xf32>
    %10 = vector.extract_strided_slice %3 {offsets = [0, 24], sizes = [16, 8], strides = [1, 1]} : vector<16x96xf32> to vector<16x8xf32>
    %11 = vector.shape_cast %10 : vector<16x8xf32> to vector<2x8x8xf32>
    %12 = tpu.concatenate %5, %7, %9, %11 in 0 : vector<2x8x8xf32>, vector<2x8x8xf32>, vector<2x8x8xf32>, vector<2x8x8xf32> -> vector<8x8x8xf32>
    %13 = vector.extract_strided_slice %3 {offsets = [0, 32], sizes = [16, 8], strides = [1, 1]} : vector<16x96xf32> to vector<16x8xf32>
    %14 = vector.shape_cast %13 : vector<16x8xf32> to vector<2x8x8xf32>
    %15 = vector.extract_strided_slice %3 {offsets = [0, 40], sizes = [16, 8], strides = [1, 1]} : vector<16x96xf32> to vector<16x8xf32>
    %16 = vector.shape_cast %15 : vector<16x8xf32> to vector<2x8x8xf32>
    %17 = vector.extract_strided_slice %3 {offsets = [0, 48], sizes = [16, 8], strides = [1, 1]} : vector<16x96xf32> to vector<16x8xf32>
    %18 = vector.shape_cast %17 : vector<16x8xf32> to vector<2x8x8xf32>
    %19 = vector.extract_strided_slice %3 {offsets = [0, 56], sizes = [16, 8], strides = [1, 1]} : vector<16x96xf32> to vector<16x8xf32>
    %20 = vector.shape_cast %19 : vector<16x8xf32> to vector<2x8x8xf32>
    %21 = tpu.concatenate %14, %16, %18, %20 in 0 : vector<2x8x8xf32>, vector<2x8x8xf32>, vector<2x8x8xf32>, vector<2x8x8xf32> -> vector<8x8x8xf32>
    %22 = vector.extract_strided_slice %3 {offsets = [0, 64], sizes = [16, 8], strides = [1, 1]} : vector<16x96xf32> to vector<16x8xf32>
    %23 = vector.shape_cast %22 : vector<16x8xf32> to vector<2x8x8xf32>
    %24 = vector.extract_strided_slice %3 {offsets = [0, 72], sizes = [16, 8], strides = [1, 1]} : vector<16x96xf32> to vector<16x8xf32>
    %25 = vector.shape_cast %24 : vector<16x8xf32> to vector<2x8x8xf32>
    %26 = vector.extract_strided_slice %3 {offsets = [0, 80], sizes = [16, 8], strides = [1, 1]} : vector<16x96xf32> to vector<16x8xf32>
    %27 = vector.shape_cast %26 : vector<16x8xf32> to vector<2x8x8xf32>
    %28 = vector.extract_strided_slice %3 {offsets = [0, 88], sizes = [16, 8], strides = [1, 1]} : vector<16x96xf32> to vector<16x8xf32>
    %29 = vector.shape_cast %28 : vector<16x8xf32> to vector<2x8x8xf32>
    %30 = tpu.concatenate %23, %25, %27, %29 in 0 : vector<2x8x8xf32>, vector<2x8x8xf32>, vector<2x8x8xf32>, vector<2x8x8xf32> -> vector<8x8x8xf32>
    "tpu.trace_start"() <{level = 10 : i32, message = "gid,gjd->gij"}> : () -> ()
    %cst_4 = arith.constant dense<0.000000e+00> : vector<8x8x8xf32>
    %31 = tpu.matmul %12, %21, %cst_4 {dimension_numbers = #tpu.dot_dimension_numbers<[2], [2], [1], [1], [0, 0, 0, 1, 1, 1], [0], [0]>} : vector<8x8x8xf32>, vector<8x8x8xf32>, vector<8x8x8xf32> -> vector<8x8x8xf32>
    "tpu.trace_stop"() : () -> ()
    %cst_5 = arith.constant dense<0xFF800000> : vector<8x8xf32>
    %32 = vector.multi_reduction <maximumf>, %31, %cst_5 [2] : vector<8x8x8xf32> to vector<8x8xf32>
    %33 = vector.shape_cast %32 : vector<8x8xf32> to vector<8x8x1xf32>
    %34 = vector.broadcast %33 : vector<8x8x1xf32> to vector<8x8x8xf32>
    %35 = arith.subf %31, %34 : vector<8x8x8xf32>
    %36 = math.exp %35 : vector<8x8x8xf32>
    %cst_6 = arith.constant dense<0.000000e+00> : vector<8x8xf32>
    %37 = vector.multi_reduction <add>, %36, %cst_6 [2] : vector<8x8x8xf32> to vector<8x8xf32>
    %38 = vector.shape_cast %37 : vector<8x8xf32> to vector<8x8x1xf32>
    %39 = tpu.reciprocal %38 : vector<8x8x1xf32> -> vector<8x8x1xf32>
    %40 = vector.broadcast %39 : vector<8x8x1xf32> to vector<8x8x8xf32>
    %41 = arith.mulf %36, %40 : vector<8x8x8xf32>
    "tpu.trace_start"() <{level = 10 : i32, message = "gij,gjd->gid"}> : () -> ()
    %cst_7 = arith.constant dense<0.000000e+00> : vector<8x8x8xf32>
    %42 = tpu.matmul %41, %30, %cst_7 {dimension_numbers = #tpu.dot_dimension_numbers<[2], [1], [1], [2], [0, 0, 0, 1, 1, 2], [0], [0]>} : vector<8x8x8xf32>, vector<8x8x8xf32>, vector<8x8x8xf32> -> vector<8x8x8xf32>
    "tpu.trace_stop"() : () -> ()
    %43 = vector.extract_strided_slice %42 {offsets = [0, 0, 0], sizes = [2, 8, 8], strides = [1, 1, 1]} : vector<8x8x8xf32> to vector<2x8x8xf32>
    %44 = vector.shape_cast %43 : vector<2x8x8xf32> to vector<16x8xf32>
    %c0_8 = arith.constant 0 : index
    %c0_9 = arith.constant 0 : index
    %45 = vector.load %arg6[%c0_8, %c0_9] : memref<16x32xf32, #tpu.memory_space<vmem>>, vector<16x8xf32>
    tpu.vector_store %arg6[%c0_8, %c0_9], %44 {strides = array<i32>} : memref<16x32xf32, #tpu.memory_space<vmem>>, vector<16x8xf32>,
    %46 = vector.extract_strided_slice %42 {offsets = [2, 0, 0], sizes = [2, 8, 8], strides = [1, 1, 1]} : vector<8x8x8xf32> to vector<2x8x8xf32>
    %47 = vector.shape_cast %46 : vector<2x8x8xf32> to vector<16x8xf32>
    %c0_10 = arith.constant 0 : index
    %c8 = arith.constant 8 : index
    %48 = vector.load %arg6[%c0_10, %c8] : memref<16x32xf32, #tpu.memory_space<vmem>>, vector<16x8xf32>
    tpu.vector_store %arg6[%c0_10, %c8], %47 {strides = array<i32>} : memref<16x32xf32, #tpu.memory_space<vmem>>, vector<16x8xf32>,
    %49 = vector.extract_strided_slice %42 {offsets = [4, 0, 0], sizes = [2, 8, 8], strides = [1, 1, 1]} : vector<8x8x8xf32> to vector<2x8x8xf32>
    %50 = vector.shape_cast %49 : vector<2x8x8xf32> to vector<16x8xf32>
    %c0_11 = arith.constant 0 : index
    %c16 = arith.constant 16 : index
    %51 = vector.load %arg6[%c0_11, %c16] : memref<16x32xf32, #tpu.memory_space<vmem>>, vector<16x8xf32>
    tpu.vector_store %arg6[%c0_11, %c16], %50 {strides = array<i32>} : memref<16x32xf32, #tpu.memory_space<vmem>>, vector<16x8xf32>,
    %52 = vector.extract_strided_slice %42 {offsets = [6, 0, 0], sizes = [2, 8, 8], strides = [1, 1, 1]} : vector<8x8x8xf32> to vector<2x8x8xf32>
    %53 = vector.shape_cast %52 : vector<2x8x8xf32> to vector<16x8xf32>
    %c0_12 = arith.constant 0 : index
    %c24 = arith.constant 24 : index
    %54 = vector.load %arg6[%c0_12, %c24] : memref<16x32xf32, #tpu.memory_space<vmem>>, vector<16x8xf32>
    tpu.vector_store %arg6[%c0_12, %c24], %53 {strides = array<i32>} : memref<16x32xf32, #tpu.memory_space<vmem>>, vector<16x8xf32>,
    %c0_13 = arith.constant 0 : index
    %c0_14 = arith.constant 0 : index
    %55 = vector.load %arg6[%c0_13, %c0_14] : memref<16x32xf32, #tpu.memory_space<vmem>>, vector<16x32xf32>
    %c0_15 = arith.constant 0 : index
    %c0_16 = arith.constant 0 : index
    %56 = vector.load %arg3[%c0_15, %c0_16] : memref<32x32xf32, #tpu.memory_space<vmem>>, vector<32x32xf32>
    %cst_17 = arith.constant dense<0.000000e+00> : vector<16x32xf32>
    %57 = tpu.matmul %55, %56, %cst_17 {dimension_numbers = #tpu.dot_dimension_numbers<[1], [0], [0], [1], [0, 0, 1, 1], [], []>} : vector<16x32xf32>, vector<32x32xf32>, vector<16x32xf32> -> vector<16x32xf32>
    %c0_18 = arith.constant 0 : index
    %c0_19 = arith.constant 0 : index
    %58 = vector.load %arg4[%c0_18, %c0_19] : memref<1x32xf32, #tpu.memory_space<vmem>>, vector<1x32xf32>
    %59 = vector.broadcast %58 : vector<1x32xf32> to vector<16x32xf32>
    %60 = arith.addf %57, %59 : vector<16x32xf32>
    %61 = vector.shape_cast %60 : vector<16x32xf32> to vector<2x8x32xf32>
    %c0_20 = arith.constant 0 : index
    %c0_21 = arith.constant 0 : index
    %c0_22 = arith.constant 0 : index
    %62 = vector.load %arg5[%c0_20, %c0_21, %c0_22] : memref<2x8x32xf32, #tpu.memory_space<vmem>>, vector<2x8x32xf32>
    tpu.vector_store %arg5[%c0_20, %c0_21, %c0_22], %61 {strides = array<i32>} : memref<2x8x32xf32, #tpu.memory_space<vmem>>, vector<2x8x32xf32>,
    return
  }
  func.func @transform_0(%arg0: i32) -> (i32, i32, i32) {
    %c0_i32 = arith.constant 0 : i32
    %c0_i32_0 = arith.constant 0 : i32
    %c0_i32_1 = arith.constant 0 : i32
    return %arg0, %c0_i32, %c0_i32_0 : i32, i32, i32
  }
  func.func @transform_1(%arg0: i32) -> (i32, i32) {
    %c0_i32 = arith.constant 0 : i32
    %c0_i32_0 = arith.constant 0 : i32
    %c0_i32_1 = arith.constant 0 : i32
    return %c0_i32, %c0_i32_0 : i32, i32
  }
  func.func @transform_2(%arg0: i32) -> (i32, i32) {
    %c0_i32 = arith.constant 0 : i32
    %c0_i32_0 = arith.constant 0 : i32
    %c0_i32_1 = arith.constant 0 : i32
    return %c0_i32, %c0_i32_0 : i32, i32
  }
  func.func @transform_3(%arg0: i32) -> (i32, i32) {
    %c0_i32 = arith.constant 0 : i32
    %c0_i32_0 = arith.constant 0 : i32
    %c0_i32_1 = arith.constant 0 : i32
    return %c0_i32, %c0_i32_0 : i32, i32
  }
  func.func @transform_4(%arg0: i32) -> (i32, i32, i32) {
    %c0_i32 = arith.constant 0 : i32
    %c0_i32_0 = arith.constant 0 : i32
    %c0_i32_1 = arith.constant 0 : i32
    return %arg0, %c0_i32, %c0_i32_0 : i32, i32, i32
  }
}

</mosaic_0001>

<llo_original>
// kernel: tpu_custom_call.1
$region0: #{tpu_custom_call.1}
  #allocation0 [shape = 'u32[]', space=smem, size = 0x4, offset = 0x4, fixed_abs, tag = 'smem constant byte address 0x4 - core index']
  #allocation1 [shape = 'u32[144,128]{1,0:T(1,128)}', space=vmem, size = 0x12000, scoped, tag = 'internal scratch']
  #allocation2 [shape = 'f32[16,32]{1,0:T(8,128)}', space=vmem, size = 0x2000, scoped, tag = 'scratch operand']
  %s0 = inlined_call_operand.hbm [shape: f32[2,8,32], index: 0, kind: input, shape index: {}]
  %s1 = inlined_call_operand.hbm [shape: f32[32,96], index: 1, kind: input, shape index: {}]
  %s2 = inlined_call_operand.hbm [shape: f32[32,32], index: 2, kind: input, shape index: {}]
  %s3 = inlined_call_operand.vmem [shape: f32[1,32], index: 3, kind: input, shape index: {}]
  %s4 = inlined_call_operand.hbm [shape: f32[2,8,32], index: 4, kind: output, shape index: {}]
  %s5 = sld [smem:[#allocation0]]
  $region38: #{tpu_custom_call.1} parent=0
    _
  %s7 = ssub.s32 1, %s5
  %s8 = scalar_select 0, %s7, %s5
  $region1: #{tpu_custom_call.1} parent=0
    #allocation3 [shape = 'u8[8192]{0}', space=vmem, size = 0x2000, scoped, tag = 'input window, operand 0, single buffered']
    #allocation4 [shape = 's32[1]{0}', space=sflag, size = 0x4, scoped, tag = 'scoped memory for tpu_custom_call.1']
    #allocation5 [shape = 's32[1]{0}', space=sflag, size = 0x4, scoped, tag = 'scoped memory for tpu_custom_call.1']
    #allocation6 [shape = 'u8[16384]{0}', space=vmem, size = 0x4000, scoped, tag = 'input window, operand 1, single buffered']
    #allocation7 [shape = 's32[1]{0}', space=sflag, size = 0x4, scoped, tag = 'scoped memory for tpu_custom_call.1']
    #allocation8 [shape = 'u8[16384]{0}', space=vmem, size = 0x4000, scoped, tag = 'input window, operand 2, single buffered']
    #allocation9 [shape = 'u8[8192]{0}', space=vmem, size = 0x2000, scoped, tag = 'output window, operand 0, single buffered']
    %9 = vsyncpa [#allocation4], 0
    %10 = vsyncpa [#allocation7], 0
    %11 = vsyncpa [#allocation5], 0
    // Predicated region
    $region2: #{tpu_custom_call.1} parent=1 // pred_check
      _
    $region3: #{tpu_custom_call.1} parent=1 // pred_check_branch
      %13 = sbr.rel (0) target = $region5
    $region4: #{tpu_custom_call.1} parent=1 // pred_region
      %s15 = ssub.s32 256, 256
      %16 = vsyncadd [#allocation4], %s15
      %s17 = sshll.u32 [#allocation3], 4
      %s18 = int_to_ptr.vmem [resolvable:$true] %s17
      %23 = dma.hbm_to_vmem [thread:$0]  %s0, 256, %s18, [#allocation4], 128, 128, 8
    $region5: #{tpu_custom_call.1} parent=1 // pred_fallthru
      _
    // Predicated region
    $region6: #{tpu_custom_call.1} parent=1 // pred_check
      _
    $region7: #{tpu_custom_call.1} parent=1 // pred_check_branch
      %25 = sbr.rel (0) target = $region9
    $region8: #{tpu_custom_call.1} parent=1 // pred_region
      %s27 = ssub.s32 512, 512
      %28 = vsyncadd [#allocation7], %s27
      %s29 = sshll.u32 [#allocation6], 4
      %s30 = int_to_ptr.vmem [resolvable:$true] %s29
      %35 = dma.hbm_to_vmem [thread:$0]  %s1, 512, %s30, [#allocation7], 128, 128, 8
    $region9: #{tpu_custom_call.1} parent=1 // pred_fallthru
      _
    // Predicated region
    $region10: #{tpu_custom_call.1} parent=1 // pred_check
      _
    $region11: #{tpu_custom_call.1} parent=1 // pred_check_branch
      %37 = sbr.rel (0) target = $region13
    $region12: #{tpu_custom_call.1} parent=1 // pred_region
      %s39 = ssub.s32 512, 512
      %40 = vsyncadd [#allocation7], %s39
      %s41 = sshll.u32 [#allocation8], 4
      %s42 = int_to_ptr.vmem [resolvable:$true] %s41
      %47 = dma.hbm_to_vmem [thread:$0]  %s2, 512, %s42, [#allocation7], 128, 128, 8
    $region13: #{tpu_custom_call.1} parent=1 // pred_fallthru
      _
    // Predicated region
    $region14: #{tpu_custom_call.1} parent=1 // pred_check
      _
    $region15: #{tpu_custom_call.1} parent=1 // pred_check_branch
      %49 = sbr.rel (0) target = $region17
    $region16: #{tpu_custom_call.1} parent=1 // pred_region
      _
    $region17: #{tpu_custom_call.1} parent=1 // pred_fallthru
      _
    // Predicated region
    $region18: #{tpu_custom_call.1} parent=1 // pred_check
      _
    $region19: #{tpu_custom_call.1} parent=1 // pred_check_branch
      %51 = sbr.rel (0) target = $region21
    $region20: #{tpu_custom_call.1} parent=1 // pred_region
      %52 = dma.done [#allocation4], 256
    $region21: #{tpu_custom_call.1} parent=1 // pred_fallthru
      _
    // Predicated region
    $region22: #{tpu_custom_call.1} parent=1 // pred_check
      _
    $region23: #{tpu_custom_call.1} parent=1 // pred_check_branch
      %54 = sbr.rel (0) target = $region25
    $region24: #{tpu_custom_call.1} parent=1 // pred_region
      %55 = dma.done [#allocation7], 512
    $region25: #{tpu_custom_call.1} parent=1 // pred_fallthru
      _
    // Predicated region
    $region26: #{tpu_custom_call.1} parent=1 // pred_check
      _
    $region27: #{tpu_custom_call.1} parent=1 // pred_check_branch
      %57 = sbr.rel (0) target = $region29
    $region28: #{tpu_custom_call.1} parent=1 // pred_region
      %58 = dma.done [#allocation7], 512
    $region29: #{tpu_custom_call.1} parent=1 // pred_fallthru
      _
    %v59 = vld [vmem:[#allocation3] sm:$0xff]
    %v60 = vld [vmem:[#allocation3 + $0x8] sm:$0xff]
    %v61 = vld [vmem:[#allocation6] sm:$0xff]
    %v62 = vld [vmem:[#allocation6 + $0x8] sm:$0xff]
    %v63 = vld [vmem:[#allocation6 + $0x10] sm:$0xff]
    %v64 = vld [vmem:[#allocation6 + $0x18] sm:$0xff]
    %vm65 = vcmask 261120
    %v67 = vsel %vm65, %v59, 0
    %v70 = vsel %vm65, %v60, 0
    %72 = vmatprep.subr.mxu0 0.0
    %73 = vmatpush1.msra.mxu0 %v61
    %74 = vmatprep.subr.mxu0 0.0
    %75 = vmatpush1.msra.mxu0 %v62
    %76 = vmatprep.subr.mxu0 0.0
    %77 = vmatpush1.msra.mxu0 %v63
    %78 = vmatprep.subr.mxu0 0.0
    %79 = vmatpush1.msra.mxu0 %v64
    %80 = vmatprep.subr.mxu0 0.0
    %81 = vmatpush1.msra.mxu0 0.0
    %82 = vmatprep.subr.mxu0 0.0
    %83 = vmatpush1.msra.mxu0 0.0
    %84 = vmatprep.subr.mxu0 0.0
    %85 = vmatpush1.msra.mxu0 0.0
    %86 = vmatprep.subr.mxu0 0.0
    %87 = vmatpush1.msra.mxu0 0.0
    %88 = vmatprep.subr.mxu0 0.0
    %89 = vmatpush1.msra.mxu0 0.0
    %90 = vmatprep.subr.mxu0 0.0
    %91 = vmatpush1.msra.mxu0 0.0
    %92 = vmatprep.subr.mxu0 0.0
    %93 = vmatpush1.msra.mxu0 0.0
    %94 = vmatprep.subr.mxu0 0.0
    %95 = vmatpush1.msra.mxu0 0.0
    %96 = vmatprep.subr.mxu0 0.0
    %97 = vmatpush1.msra.mxu0 0.0
    %98 = vmatprep.subr.mxu0 0.0
    %99 = vmatpush1.msra.mxu0 0.0
    %100 = vmatprep.subr.mxu0 0.0
    %101 = vmatpush1.msra.mxu0 0.0
    %102 = vmatprep.subr.mxu0 0.0
    %103 = vmatpush1.msra.mxu0 0.0
    %104 = vmatprep.subr.mxu0 0.0
    %105 = vmatpush1.msra.mxu0 0.0
    %106 = vmatprep.subr.mxu0 0.0
    %107 = vmatpush1.msra.mxu0 0.0
    %108 = vmatprep.subr.mxu0 0.0
    %109 = vmatpush1.msra.mxu0 0.0
    %110 = vmatprep.subr.mxu0 0.0
    %111 = vmatpush1.msra.mxu0 0.0
    %112 = vmatprep.subr.mxu0 0.0
    %113 = vmatpush1.msra.mxu0 0.0
    %114 = vmatprep.subr.mxu0 0.0
    %115 = vmatpush1.msra.mxu0 0.0
    %116 = vmatprep.subr.mxu0 0.0
    %117 = vmatpush1.msra.mxu0 0.0
    %118 = vmatprep.subr.mxu0 0.0
    %119 = vmatpush1.msra.mxu0 0.0
    %120 = vmatprep.subr.mxu0 0.0
    %121 = vmatpush1.msra.mxu0 0.0
    %122 = vmatprep.subr.mxu0 0.0
    %123 = vmatpush1.msra.mxu0 0.0
    %124 = vmatprep.subr.mxu0 0.0
    %125 = vmatpush1.msra.mxu0 0.0
    %126 = vmatprep.subr.mxu0 0.0
    %127 = vmatpush1.msra.mxu0 0.0
    %128 = vmatprep.subr.mxu0 0.0
    %129 = vmatpush1.msra.mxu0 0.0
    %130 = vmatprep.subr.mxu0 0.0
    %131 = vmatpush1.msra.mxu0 0.0
    %132 = vmatprep.subr.mxu0 0.0
    %133 = vmatpush1.msra.mxu0 0.0
    %134 = vmatprep.subr.mxu0 0.0
    %135 = vmatpush1.msra.mxu0 0.0
    %136 = vmatprep.mubr.f32.mxu0 0.0
    %137 = vmatmul.mubr.f32.gmra.mrb[0].mxu0 %v67
    %v138 = vpop.f32.mrb[0].mxu0
    %v139 = vadd.f32 0.0, %v138
    %v140 = vpop.f32.mrb[0].mxu0
    %141 = vmatprep.mubr.f32.mxu0 0.0
    %142 = vmatmul.mubr.f32.gmra.mrb[0].mxu0 %v70
    %v143 = vpop.f32.mrb[0].mxu0
    %v144 = vadd.f32 0.0, %v143
    %v145 = vpop.f32.mrb[0].mxu0
    %146 = vdwg.mxu0
    %149 = vrot.lane.b32.xlu0 %v139, 120
    %v150 = vpop.permute.xlu0 %149
    %151 = vrot.lane.b32.xlu0 %v144, 120
    %v152 = vpop.permute.xlu0 %151
    %153 = vrot.lane.b32.xlu0 %v139, 112
    %v154 = vpop.permute.xlu0 %153
    %155 = vrot.lane.b32.xlu0 %v144, 112
    %v156 = vpop.permute.xlu0 %155
    %157 = vrot.lane.b32.xlu0 %v139, 104
    %v158 = vpop.permute.xlu0 %157
    %159 = vrot.lane.b32.xlu0 %v144, 104
    %v160 = vpop.permute.xlu0 %159
    %161 = vrot.lane.b32.xlu0 %v139, 96
    %v162 = vpop.permute.xlu0 %161
    %vm163 = vcmask 64512
    %v164 = vsel %vm163, %v139, 0
    %v166 = vsel %vm163, %v162, 0
    %168 = vmatprep.subr.mxu0 0.0
    %169 = vmatpush1.xpose.msra.mxu0 %v166
    %170 = vmatprep.subr.mxu0 0.0
    %171 = vmatpush1.xpose.msra.mxu0 0.0
    %172 = vmatprep.subr.mxu0 0.0
    %173 = vmatpush1.xpose.msra.mxu0 0.0
    %174 = vmatprep.subr.mxu0 0.0
    %175 = vmatpush1.xpose.msra.mxu0 0.0
    %176 = vmatprep.subr.mxu0 0.0
    %177 = vmatpush1.xpose.msra.mxu0 0.0
    %178 = vmatprep.subr.mxu0 0.0
    %179 = vmatpush1.xpose.msra.mxu0 0.0
    %180 = vmatprep.subr.mxu0 0.0
    %181 = vmatpush1.xpose.msra.mxu0 0.0
    %182 = vmatprep.subr.mxu0 0.0
    %183 = vmatpush1.xpose.msra.mxu0 0.0
    %184 = vmatprep.subr.mxu0 0.0
    %185 = vmatpush1.xpose.msra.mxu0 0.0
    %186 = vmatprep.subr.mxu0 0.0
    %187 = vmatpush1.xpose.msra.mxu0 0.0
    %188 = vmatprep.subr.mxu0 0.0
    %189 = vmatpush1.xpose.msra.mxu0 0.0
    %190 = vmatprep.subr.mxu0 0.0
    %191 = vmatpush1.xpose.msra.mxu0 0.0
    %192 = vmatprep.subr.mxu0 0.0
    %193 = vmatpush1.xpose.msra.mxu0 0.0
    %194 = vmatprep.subr.mxu0 0.0
    %195 = vmatpush1.xpose.msra.mxu0 0.0
    %196 = vmatprep.subr.mxu0 0.0
    %197 = vmatpush1.xpose.msra.mxu0 0.0
    %198 = vmatprep.subr.mxu0 0.0
    %199 = vmatpush1.xpose.msra.mxu0 0.0
    %200 = vmatprep.subr.mxu0 0.0
    %201 = vmatpush1.xpose.msra.mxu0 0.0
    %202 = vmatprep.subr.mxu0 0.0
    %203 = vmatpush1.xpose.msra.mxu0 0.0
    %204 = vmatprep.subr.mxu0 0.0
    %205 = vmatpush1.xpose.msra.mxu0 0.0
    %206 = vmatprep.subr.mxu0 0.0
    %207 = vmatpush1.xpose.msra.mxu0 0.0
    %208 = vmatprep.subr.mxu0 0.0
    %209 = vmatpush1.xpose.msra.mxu0 0.0
    %210 = vmatprep.subr.mxu0 0.0
    %211 = vmatpush1.xpose.msra.mxu0 0.0
    %212 = vmatprep.subr.mxu0 0.0
    %213 = vmatpush1.xpose.msra.mxu0 0.0
    %214 = vmatprep.subr.mxu0 0.0
    %215 = vmatpush1.xpose.msra.mxu0 0.0
    %216 = vmatprep.subr.mxu0 0.0
    %217 = vmatpush1.xpose.msra.mxu0 0.0
    %218 = vmatprep.subr.mxu0 0.0
    %219 = vmatpush1.xpose.msra.mxu0 0.0
    %220 = vmatprep.subr.mxu0 0.0
    %221 = vmatpush1.xpose.msra.mxu0 0.0
    %222 = vmatprep.subr.mxu0 0.0
    %223 = vmatpush1.xpose.msra.mxu0 0.0
    %224 = vmatprep.subr.mxu0 0.0
    %225 = vmatpush1.xpose.msra.mxu0 0.0
    %226 = vmatprep.subr.mxu0 0.0
    %227 = vmatpush1.xpose.msra.mxu0 0.0
    %228 = vmatprep.subr.mxu0 0.0
    %229 = vmatpush1.xpose.msra.mxu0 0.0
    %230 = vmatprep.subr.mxu0 0.0
    %231 = vmatpush1.xpose.msra.mxu0 0.0
    %232 = vmatprep.mubr.f32.mxu0 0.0
    %233 = vmatmul.mubr.f32.gmra.mrb[0].mxu0 %v164
    %v234 = vpop.f32.mrb[0].mxu0
    %v235 = vadd.f32 0.0, %v234
    %v236 = vpop.f32.mrb[0].mxu0
    %237 = vdwg.mxu0
    %238 = vrot.lane.b32.xlu0 %v144, 96
    %v239 = vpop.permute.xlu0 %238
    %v240 = vsel %vm163, %v144, 0
    %v242 = vsel %vm163, %v239, 0
    %244 = vmatprep.subr.mxu0 0.0
    %245 = vmatpush1.xpose.msra.mxu0 %v242
    %246 = vmatprep.subr.mxu0 0.0
    %247 = vmatpush1.xpose.msra.mxu0 0.0
    %248 = vmatprep.subr.mxu0 0.0
    %249 = vmatpush1.xpose.msra.mxu0 0.0
    %250 = vmatprep.subr.mxu0 0.0
    %251 = vmatpush1.xpose.msra.mxu0 0.0
    %252 = vmatprep.subr.mxu0 0.0
    %253 = vmatpush1.xpose.msra.mxu0 0.0
    %254 = vmatprep.subr.mxu0 0.0
    %255 = vmatpush1.xpose.msra.mxu0 0.0
    %256 = vmatprep.subr.mxu0 0.0
    %257 = vmatpush1.xpose.msra.mxu0 0.0
    %258 = vmatprep.subr.mxu0 0.0
    %259 = vmatpush1.xpose.msra.mxu0 0.0
    %260 = vmatprep.subr.mxu0 0.0
    %261 = vmatpush1.xpose.msra.mxu0 0.0
    %262 = vmatprep.subr.mxu0 0.0
    %263 = vmatpush1.xpose.msra.mxu0 0.0
    %264 = vmatprep.subr.mxu0 0.0
    %265 = vmatpush1.xpose.msra.mxu0 0.0
    %266 = vmatprep.subr.mxu0 0.0
    %267 = vmatpush1.xpose.msra.mxu0 0.0
    %268 = vmatprep.subr.mxu0 0.0
    %269 = vmatpush1.xpose.msra.mxu0 0.0
    %270 = vmatprep.subr.mxu0 0.0
    %271 = vmatpush1.xpose.msra.mxu0 0.0
    %272 = vmatprep.subr.mxu0 0.0
    %273 = vmatpush1.xpose.msra.mxu0 0.0
    %274 = vmatprep.subr.mxu0 0.0
    %275 = vmatpush1.xpose.msra.mxu0 0.0
    %276 = vmatprep.subr.mxu0 0.0
    %277 = vmatpush1.xpose.msra.mxu0 0.0
    %278 = vmatprep.subr.mxu0 0.0
    %279 = vmatpush1.xpose.msra.mxu0 0.0
    %280 = vmatprep.subr.mxu0 0.0
    %281 = vmatpush1.xpose.msra.mxu0 0.0
    %282 = vmatprep.subr.mxu0 0.0
    %283 = vmatpush1.xpose.msra.mxu0 0.0
    %284 = vmatprep.subr.mxu0 0.0
    %285 = vmatpush1.xpose.msra.mxu0 0.0
    %286 = vmatprep.subr.mxu0 0.0
    %287 = vmatpush1.xpose.msra.mxu0 0.0
    %288 = vmatprep.subr.mxu0 0.0
    %289 = vmatpush1.xpose.msra.mxu0 0.0
    %290 = vmatprep.subr.mxu0 0.0
    %291 = vmatpush1.xpose.msra.mxu0 0.0
    %292 = vmatprep.subr.mxu0 0.0
    %293 = vmatpush1.xpose.msra.mxu0 0.0
    %294 = vmatprep.subr.mxu0 0.0
    %295 = vmatpush1.xpose.msra.mxu0 0.0
    %296 = vmatprep.subr.mxu0 0.0
    %297 = vmatpush1.xpose.msra.mxu0 0.0
    %298 = vmatprep.subr.mxu0 0.0
    %299 = vmatpush1.xpose.msra.mxu0 0.0
    %300 = vmatprep.subr.mxu0 0.0
    %301 = vmatpush1.xpose.msra.mxu0 0.0
    %302 = vmatprep.subr.mxu0 0.0
    %303 = vmatpush1.xpose.msra.mxu0 0.0
    %304 = vmatprep.subr.mxu0 0.0
    %305 = vmatpush1.xpose.msra.mxu0 0.0
    %306 = vmatprep.subr.mxu0 0.0
    %307 = vmatpush1.xpose.msra.mxu0 0.0
    %308 = vmatprep.mubr.f32.mxu0 0.0
    %309 = vmatmul.mubr.f32.gmra.mrb[0].mxu0 %v240
    %v310 = vpop.f32.mrb[0].mxu0
    %v311 = vadd.f32 0.0, %v310
    %v312 = vpop.f32.mrb[0].mxu0
    %313 = vdwg.mxu0
    %314 = vrot.lane.b32.xlu0 %v150, 96
    %v315 = vpop.permute.xlu0 %314
    %v316 = vsel %vm163, %v150, 0
    %v318 = vsel %vm163, %v315, 0
    %320 = vmatprep.subr.mxu0 0.0
    %321 = vmatpush1.xpose.msra.mxu0 %v318
    %322 = vmatprep.subr.mxu0 0.0
    %323 = vmatpush1.xpose.msra.mxu0 0.0
    %324 = vmatprep.subr.mxu0 0.0
    %325 = vmatpush1.xpose.msra.mxu0 0.0
    %326 = vmatprep.subr.mxu0 0.0
    %327 = vmatpush1.xpose.msra.mxu0 0.0
    %328 = vmatprep.subr.mxu0 0.0
    %329 = vmatpush1.xpose.msra.mxu0 0.0
    %330 = vmatprep.subr.mxu0 0.0
    %331 = vmatpush1.xpose.msra.mxu0 0.0
    %332 = vmatprep.subr.mxu0 0.0
    %333 = vmatpush1.xpose.msra.mxu0 0.0
    %334 = vmatprep.subr.mxu0 0.0
    %335 = vmatpush1.xpose.msra.mxu0 0.0
    %336 = vmatprep.subr.mxu0 0.0
    %337 = vmatpush1.xpose.msra.mxu0 0.0
    %338 = vmatprep.subr.mxu0 0.0
    %339 = vmatpush1.xpose.msra.mxu0 0.0
    %340 = vmatprep.subr.mxu0 0.0
    %341 = vmatpush1.xpose.msra.mxu0 0.0
    %342 = vmatprep.subr.mxu0 0.0
    %343 = vmatpush1.xpose.msra.mxu0 0.0
    %344 = vmatprep.subr.mxu0 0.0
    %345 = vmatpush1.xpose.msra.mxu0 0.0
    %346 = vmatprep.subr.mxu0 0.0
    %347 = vmatpush1.xpose.msra.mxu0 0.0
    %348 = vmatprep.subr.mxu0 0.0
    %349 = vmatpush1.xpose.msra.mxu0 0.0
    %350 = vmatprep.subr.mxu0 0.0
    %351 = vmatpush1.xpose.msra.mxu0 0.0
    %352 = vmatprep.subr.mxu0 0.0
    %353 = vmatpush1.xpose.msra.mxu0 0.0
    %354 = vmatprep.subr.mxu0 0.0
    %355 = vmatpush1.xpose.msra.mxu0 0.0
    %356 = vmatprep.subr.mxu0 0.0
    %357 = vmatpush1.xpose.msra.mxu0 0.0
    %358 = vmatprep.subr.mxu0 0.0
    %359 = vmatpush1.xpose.msra.mxu0 0.0
    %360 = vmatprep.subr.mxu0 0.0
    %361 = vmatpush1.xpose.msra.mxu0 0.0
    %362 = vmatprep.subr.mxu0 0.0
    %363 = vmatpush1.xpose.msra.mxu0 0.0
    %364 = vmatprep.subr.mxu0 0.0
    %365 = vmatpush1.xpose.msra.mxu0 0.0
    %366 = vmatprep.subr.mxu0 0.0
    %367 = vmatpush1.xpose.msra.mxu0 0.0
    %368 = vmatprep.subr.mxu0 0.0
    %369 = vmatpush1.xpose.msra.mxu0 0.0
    %370 = vmatprep.subr.mxu0 0.0
    %371 = vmatpush1.xpose.msra.mxu0 0.0
    %372 = vmatprep.subr.mxu0 0.0
    %373 = vmatpush1.xpose.msra.mxu0 0.0
    %374 = vmatprep.subr.mxu0 0.0
    %375 = vmatpush1.xpose.msra.mxu0 0.0
    %376 = vmatprep.subr.mxu0 0.0
    %377 = vmatpush1.xpose.msra.mxu0 0.0
    %378 = vmatprep.subr.mxu0 0.0
    %379 = vmatpush1.xpose.msra.mxu0 0.0
    %380 = vmatprep.subr.mxu0 0.0
    %381 = vmatpush1.xpose.msra.mxu0 0.0
    %382 = vmatprep.subr.mxu0 0.0
    %383 = vmatpush1.xpose.msra.mxu0 0.0
    %384 = vmatprep.mubr.f32.mxu0 0.0
    %385 = vmatmul.mubr.f32.gmra.mrb[0].mxu0 %v316
    %v386 = vpop.f32.mrb[0].mxu0
    %v387 = vadd.f32 0.0, %v386
    %v388 = vpop.f32.mrb[0].mxu0
    %389 = vdwg.mxu0
    %390 = vrot.lane.b32.xlu0 %v152, 96
    %v391 = vpop.permute.xlu0 %390
    %v392 = vsel %vm163, %v152, 0
    %v394 = vsel %vm163, %v391, 0
    %396 = vmatprep.subr.mxu0 0.0
    %397 = vmatpush1.xpose.msra.mxu0 %v394
    %398 = vmatprep.subr.mxu0 0.0
    %399 = vmatpush1.xpose.msra.mxu0 0.0
    %400 = vmatprep.subr.mxu0 0.0
    %401 = vmatpush1.xpose.msra.mxu0 0.0
    %402 = vmatprep.subr.mxu0 0.0
    %403 = vmatpush1.xpose.msra.mxu0 0.0
    %404 = vmatprep.subr.mxu0 0.0
    %405 = vmatpush1.xpose.msra.mxu0 0.0
    %406 = vmatprep.subr.mxu0 0.0
    %407 = vmatpush1.xpose.msra.mxu0 0.0
    %408 = vmatprep.subr.mxu0 0.0
    %409 = vmatpush1.xpose.msra.mxu0 0.0
    %410 = vmatprep.subr.mxu0 0.0
    %411 = vmatpush1.xpose.msra.mxu0 0.0
    %412 = vmatprep.subr.mxu0 0.0
    %413 = vmatpush1.xpose.msra.mxu0 0.0
    %414 = vmatprep.subr.mxu0 0.0
    %415 = vmatpush1.xpose.msra.mxu0 0.0
    %416 = vmatprep.subr.mxu0 0.0
    %417 = vmatpush1.xpose.msra.mxu0 0.0
    %418 = vmatprep.subr.mxu0 0.0
    %419 = vmatpush1.xpose.msra.mxu0 0.0
    %420 = vmatprep.subr.mxu0 0.0
    %421 = vmatpush1.xpose.msra.mxu0 0.0
    %422 = vmatprep.subr.mxu0 0.0
    %423 = vmatpush1.xpose.msra.mxu0 0.0
    %424 = vmatprep.subr.mxu0 0.0
    %425 = vmatpush1.xpose.msra.mxu0 0.0
    %426 = vmatprep.subr.mxu0 0.0
    %427 = vmatpush1.xpose.msra.mxu0 0.0
    %428 = vmatprep.subr.mxu0 0.0
    %429 = vmatpush1.xpose.msra.mxu0 0.0
    %430 = vmatprep.subr.mxu0 0.0
    %431 = vmatpush1.xpose.msra.mxu0 0.0
    %432 = vmatprep.subr.mxu0 0.0
    %433 = vmatpush1.xpose.msra.mxu0 0.0
    %434 = vmatprep.subr.mxu0 0.0
    %435 = vmatpush1.xpose.msra.mxu0 0.0
    %436 = vmatprep.subr.mxu0 0.0
    %437 = vmatpush1.xpose.msra.mxu0 0.0
    %438 = vmatprep.subr.mxu0 0.0
    %439 = vmatpush1.xpose.msra.mxu0 0.0
    %440 = vmatprep.subr.mxu0 0.0
    %441 = vmatpush1.xpose.msra.mxu0 0.0
    %442 = vmatprep.subr.mxu0 0.0
    %443 = vmatpush1.xpose.msra.mxu0 0.0
    %444 = vmatprep.subr.mxu0 0.0
    %445 = vmatpush1.xpose.msra.mxu0 0.0
    %446 = vmatprep.subr.mxu0 0.0
    %447 = vmatpush1.xpose.msra.mxu0 0.0
    %448 = vmatprep.subr.mxu0 0.0
    %449 = vmatpush1.xpose.msra.mxu0 0.0
    %450 = vmatprep.subr.mxu0 0.0
    %451 = vmatpush1.xpose.msra.mxu0 0.0
    %452 = vmatprep.subr.mxu0 0.0
    %453 = vmatpush1.xpose.msra.mxu0 0.0
    %454 = vmatprep.subr.mxu0 0.0
    %455 = vmatpush1.xpose.msra.mxu0 0.0
    %456 = vmatprep.subr.mxu0 0.0
    %457 = vmatpush1.xpose.msra.mxu0 0.0
    %458 = vmatprep.subr.mxu0 0.0
    %459 = vmatpush1.xpose.msra.mxu0 0.0
    %460 = vmatprep.mubr.f32.mxu0 0.0
    %461 = vmatmul.mubr.f32.gmra.mrb[0].mxu0 %v392
    %v462 = vpop.f32.mrb[0].mxu0
    %v463 = vadd.f32 0.0, %v462
    %v464 = vpop.f32.mrb[0].mxu0
    %465 = vdwg.mxu0
    %466 = vrot.lane.b32.xlu0 %v154, 96
    %v467 = vpop.permute.xlu0 %466
    %v468 = vsel %vm163, %v154, 0
    %v470 = vsel %vm163, %v467, 0
    %472 = vmatprep.subr.mxu0 0.0
    %473 = vmatpush1.xpose.msra.mxu0 %v470
    %474 = vmatprep.subr.mxu0 0.0
    %475 = vmatpush1.xpose.msra.mxu0 0.0
    %476 = vmatprep.subr.mxu0 0.0
    %477 = vmatpush1.xpose.msra.mxu0 0.0
    %478 = vmatprep.subr.mxu0 0.0
    %479 = vmatpush1.xpose.msra.mxu0 0.0
    %480 = vmatprep.subr.mxu0 0.0
    %481 = vmatpush1.xpose.msra.mxu0 0.0
    %482 = vmatprep.subr.mxu0 0.0
    %483 = vmatpush1.xpose.msra.mxu0 0.0
    %484 = vmatprep.subr.mxu0 0.0
    %485 = vmatpush1.xpose.msra.mxu0 0.0
    %486 = vmatprep.subr.mxu0 0.0
    %487 = vmatpush1.xpose.msra.mxu0 0.0
    %488 = vmatprep.subr.mxu0 0.0
    %489 = vmatpush1.xpose.msra.mxu0 0.0
    %490 = vmatprep.subr.mxu0 0.0
    %491 = vmatpush1.xpose.msra.mxu0 0.0
    %492 = vmatprep.subr.mxu0 0.0
    %493 = vmatpush1.xpose.msra.mxu0 0.0
    %494 = vmatprep.subr.mxu0 0.0
    %495 = vmatpush1.xpose.msra.mxu0 0.0
    %496 = vmatprep.subr.mxu0 0.0
    %497 = vmatpush1.xpose.msra.mxu0 0.0
    %498 = vmatprep.subr.mxu0 0.0
    %499 = vmatpush1.xpose.msra.mxu0 0.0
    %500 = vmatprep.subr.mxu0 0.0
    %501 = vmatpush1.xpose.msra.mxu0 0.0
    %502 = vmatprep.subr.mxu0 0.0
    %503 = vmatpush1.xpose.msra.mxu0 0.0
    %504 = vmatprep.subr.mxu0 0.0
    %505 = vmatpush1.xpose.msra.mxu0 0.0
    %506 = vmatprep.subr.mxu0 0.0
    %507 = vmatpush1.xpose.msra.mxu0 0.0
    %508 = vmatprep.subr.mxu0 0.0
    %509 = vmatpush1.xpose.msra.mxu0 0.0
    %510 = vmatprep.subr.mxu0 0.0
    %511 = vmatpush1.xpose.msra.mxu0 0.0
    %512 = vmatprep.subr.mxu0 0.0
    %513 = vmatpush1.xpose.msra.mxu0 0.0
    %514 = vmatprep.subr.mxu0 0.0
    %515 = vmatpush1.xpose.msra.mxu0 0.0
    %516 = vmatprep.subr.mxu0 0.0
    %517 = vmatpush1.xpose.msra.mxu0 0.0
    %518 = vmatprep.subr.mxu0 0.0
    %519 = vmatpush1.xpose.msra.mxu0 0.0
    %520 = vmatprep.subr.mxu0 0.0
    %521 = vmatpush1.xpose.msra.mxu0 0.0
    %522 = vmatprep.subr.mxu0 0.0
    %523 = vmatpush1.xpose.msra.mxu0 0.0
    %524 = vmatprep.subr.mxu0 0.0
    %525 = vmatpush1.xpose.msra.mxu0 0.0
    %526 = vmatprep.subr.mxu0 0.0
    %527 = vmatpush1.xpose.msra.mxu0 0.0
    %528 = vmatprep.subr.mxu0 0.0
    %529 = vmatpush1.xpose.msra.mxu0 0.0
    %530 = vmatprep.subr.mxu0 0.0
    %531 = vmatpush1.xpose.msra.mxu0 0.0
    %532 = vmatprep.subr.mxu0 0.0
    %533 = vmatpush1.xpose.msra.mxu0 0.0
    %534 = vmatprep.subr.mxu0 0.0
    %535 = vmatpush1.xpose.msra.mxu0 0.0
    %536 = vmatprep.mubr.f32.mxu0 0.0
    %537 = vmatmul.mubr.f32.gmra.mrb[0].mxu0 %v468
    %v538 = vpop.f32.mrb[0].mxu0
    %v539 = vadd.f32 0.0, %v538
    %v540 = vpop.f32.mrb[0].mxu0
    %541 = vdwg.mxu0
    %542 = vrot.lane.b32.xlu0 %v156, 96
    %v543 = vpop.permute.xlu0 %542
    %v544 = vsel %vm163, %v156, 0
    %v546 = vsel %vm163, %v543, 0
    %548 = vmatprep.subr.mxu0 0.0
    %549 = vmatpush1.xpose.msra.mxu0 %v546
    %550 = vmatprep.subr.mxu0 0.0
    %551 = vmatpush1.xpose.msra.mxu0 0.0
    %552 = vmatprep.subr.mxu0 0.0
    %553 = vmatpush1.xpose.msra.mxu0 0.0
    %554 = vmatprep.subr.mxu0 0.0
    %555 = vmatpush1.xpose.msra.mxu0 0.0
    %556 = vmatprep.subr.mxu0 0.0
    %557 = vmatpush1.xpose.msra.mxu0 0.0
    %558 = vmatprep.subr.mxu0 0.0
    %559 = vmatpush1.xpose.msra.mxu0 0.0
    %560 = vmatprep.subr.mxu0 0.0
    %561 = vmatpush1.xpose.msra.mxu0 0.0
    %562 = vmatprep.subr.mxu0 0.0
    %563 = vmatpush1.xpose.msra.mxu0 0.0
    %564 = vmatprep.subr.mxu0 0.0
    %565 = vmatpush1.xpose.msra.mxu0 0.0
    %566 = vmatprep.subr.mxu0 0.0
    %567 = vmatpush1.xpose.msra.mxu0 0.0
    %568 = vmatprep.subr.mxu0 0.0
    %569 = vmatpush1.xpose.msra.mxu0 0.0
    %570 = vmatprep.subr.mxu0 0.0
    %571 = vmatpush1.xpose.msra.mxu0 0.0
    %572 = vmatprep.subr.mxu0 0.0
    %573 = vmatpush1.xpose.msra.mxu0 0.0
    %574 = vmatprep.subr.mxu0 0.0
    %575 = vmatpush1.xpose.msra.mxu0 0.0
    %576 = vmatprep.subr.mxu0 0.0
    %577 = vmatpush1.xpose.msra.mxu0 0.0
    %578 = vmatprep.subr.mxu0 0.0
    %579 = vmatpush1.xpose.msra.mxu0 0.0
    %580 = vmatprep.subr.mxu0 0.0
    %581 = vmatpush1.xpose.msra.mxu0 0.0
    %582 = vmatprep.subr.mxu0 0.0
    %583 = vmatpush1.xpose.msra.mxu0 0.0
    %584 = vmatprep.subr.mxu0 0.0
    %585 = vmatpush1.xpose.msra.mxu0 0.0
    %586 = vmatprep.subr.mxu0 0.0
    %587 = vmatpush1.xpose.msra.mxu0 0.0
    %588 = vmatprep.subr.mxu0 0.0
    %589 = vmatpush1.xpose.msra.mxu0 0.0
    %590 = vmatprep.subr.mxu0 0.0
    %591 = vmatpush1.xpose.msra.mxu0 0.0
    %592 = vmatprep.subr.mxu0 0.0
    %593 = vmatpush1.xpose.msra.mxu0 0.0
    %594 = vmatprep.subr.mxu0 0.0
    %595 = vmatpush1.xpose.msra.mxu0 0.0
    %596 = vmatprep.subr.mxu0 0.0
    %597 = vmatpush1.xpose.msra.mxu0 0.0
    %598 = vmatprep.subr.mxu0 0.0
    %599 = vmatpush1.xpose.msra.mxu0 0.0
    %600 = vmatprep.subr.mxu0 0.0
    %601 = vmatpush1.xpose.msra.mxu0 0.0
    %602 = vmatprep.subr.mxu0 0.0
    %603 = vmatpush1.xpose.msra.mxu0 0.0
    %604 = vmatprep.subr.mxu0 0.0
    %605 = vmatpush1.xpose.msra.mxu0 0.0
    %606 = vmatprep.subr.mxu0 0.0
    %607 = vmatpush1.xpose.msra.mxu0 0.0
    %608 = vmatprep.subr.mxu0 0.0
    %609 = vmatpush1.xpose.msra.mxu0 0.0
    %610 = vmatprep.subr.mxu0 0.0
    %611 = vmatpush1.xpose.msra.mxu0 0.0
    %612 = vmatprep.mubr.f32.mxu0 0.0
    %613 = vmatmul.mubr.f32.gmra.mrb[0].mxu0 %v544
    %v614 = vpop.f32.mrb[0].mxu0
    %v615 = vadd.f32 0.0, %v614
    %v616 = vpop.f32.mrb[0].mxu0
    %617 = vdwg.mxu0
    %618 = vrot.lane.b32.xlu0 %v158, 96
    %v619 = vpop.permute.xlu0 %618
    %v620 = vsel %vm163, %v158, 0
    %v622 = vsel %vm163, %v619, 0
    %624 = vmatprep.subr.mxu0 0.0
    %625 = vmatpush1.xpose.msra.mxu0 %v622
    %626 = vmatprep.subr.mxu0 0.0
    %627 = vmatpush1.xpose.msra.mxu0 0.0
    %628 = vmatprep.subr.mxu0 0.0
    %629 = vmatpush1.xpose.msra.mxu0 0.0
    %630 = vmatprep.subr.mxu0 0.0
    %631 = vmatpush1.xpose.msra.mxu0 0.0
    %632 = vmatprep.subr.mxu0 0.0
    %633 = vmatpush1.xpose.msra.mxu0 0.0
    %634 = vmatprep.subr.mxu0 0.0
    %635 = vmatpush1.xpose.msra.mxu0 0.0
    %636 = vmatprep.subr.mxu0 0.0
    %637 = vmatpush1.xpose.msra.mxu0 0.0
    %638 = vmatprep.subr.mxu0 0.0
    %639 = vmatpush1.xpose.msra.mxu0 0.0
    %640 = vmatprep.subr.mxu0 0.0
    %641 = vmatpush1.xpose.msra.mxu0 0.0
    %642 = vmatprep.subr.mxu0 0.0
    %643 = vmatpush1.xpose.msra.mxu0 0.0
    %644 = vmatprep.subr.mxu0 0.0
    %645 = vmatpush1.xpose.msra.mxu0 0.0
    %646 = vmatprep.subr.mxu0 0.0
    %647 = vmatpush1.xpose.msra.mxu0 0.0
    %648 = vmatprep.subr.mxu0 0.0
    %649 = vmatpush1.xpose.msra.mxu0 0.0
    %650 = vmatprep.subr.mxu0 0.0
    %651 = vmatpush1.xpose.msra.mxu0 0.0
    %652 = vmatprep.subr.mxu0 0.0
    %653 = vmatpush1.xpose.msra.mxu0 0.0
    %654 = vmatprep.subr.mxu0 0.0
    %655 = vmatpush1.xpose.msra.mxu0 0.0
    %656 = vmatprep.subr.mxu0 0.0
    %657 = vmatpush1.xpose.msra.mxu0 0.0
    %658 = vmatprep.subr.mxu0 0.0
    %659 = vmatpush1.xpose.msra.mxu0 0.0
    %660 = vmatprep.subr.mxu0 0.0
    %661 = vmatpush1.xpose.msra.mxu0 0.0
    %662 = vmatprep.subr.mxu0 0.0
    %663 = vmatpush1.xpose.msra.mxu0 0.0
    %664 = vmatprep.subr.mxu0 0.0
    %665 = vmatpush1.xpose.msra.mxu0 0.0
    %666 = vmatprep.subr.mxu0 0.0
    %667 = vmatpush1.xpose.msra.mxu0 0.0
    %668 = vmatprep.subr.mxu0 0.0
    %669 = vmatpush1.xpose.msra.mxu0 0.0
    %670 = vmatprep.subr.mxu0 0.0
    %671 = vmatpush1.xpose.msra.mxu0 0.0
    %672 = vmatprep.subr.mxu0 0.0
    %673 = vmatpush1.xpose.msra.mxu0 0.0
    %674 = vmatprep.subr.mxu0 0.0
    %675 = vmatpush1.xpose.msra.mxu0 0.0
    %676 = vmatprep.subr.mxu0 0.0
    %677 = vmatpush1.xpose.msra.mxu0 0.0
    %678 = vmatprep.subr.mxu0 0.0
    %679 = vmatpush1.xpose.msra.mxu0 0.0
    %680 = vmatprep.subr.mxu0 0.0
    %681 = vmatpush1.xpose.msra.mxu0 0.0
    %682 = vmatprep.subr.mxu0 0.0
    %683 = vmatpush1.xpose.msra.mxu0 0.0
    %684 = vmatprep.subr.mxu0 0.0
    %685 = vmatpush1.xpose.msra.mxu0 0.0
    %686 = vmatprep.subr.mxu0 0.0
    %687 = vmatpush1.xpose.msra.mxu0 0.0
    %688 = vmatprep.mubr.f32.mxu0 0.0
    %689 = vmatmul.mubr.f32.gmra.mrb[0].mxu0 %v620
    %v690 = vpop.f32.mrb[0].mxu0
    %v691 = vadd.f32 0.0, %v690
    %v692 = vpop.f32.mrb[0].mxu0
    %693 = vdwg.mxu0
    %694 = vrot.lane.b32.xlu0 %v160, 96
    %v695 = vpop.permute.xlu0 %694
    %v696 = vsel %vm163, %v160, 0
    %v698 = vsel %vm163, %v695, 0
    %700 = vmatprep.subr.mxu0 0.0
    %701 = vmatpush1.xpose.msra.mxu0 %v698
    %702 = vmatprep.subr.mxu0 0.0
    %703 = vmatpush1.xpose.msra.mxu0 0.0
    %704 = vmatprep.subr.mxu0 0.0
    %705 = vmatpush1.xpose.msra.mxu0 0.0
    %706 = vmatprep.subr.mxu0 0.0
    %707 = vmatpush1.xpose.msra.mxu0 0.0
    %708 = vmatprep.subr.mxu0 0.0
    %709 = vmatpush1.xpose.msra.mxu0 0.0
    %710 = vmatprep.subr.mxu0 0.0
    %711 = vmatpush1.xpose.msra.mxu0 0.0
    %712 = vmatprep.subr.mxu0 0.0
    %713 = vmatpush1.xpose.msra.mxu0 0.0
    %714 = vmatprep.subr.mxu0 0.0
    %715 = vmatpush1.xpose.msra.mxu0 0.0
    %716 = vmatprep.subr.mxu0 0.0
    %717 = vmatpush1.xpose.msra.mxu0 0.0
    %718 = vmatprep.subr.mxu0 0.0
    %719 = vmatpush1.xpose.msra.mxu0 0.0
    %720 = vmatprep.subr.mxu0 0.0
    %721 = vmatpush1.xpose.msra.mxu0 0.0
    %722 = vmatprep.subr.mxu0 0.0
    %723 = vmatpush1.xpose.msra.mxu0 0.0
    %724 = vmatprep.subr.mxu0 0.0
    %725 = vmatpush1.xpose.msra.mxu0 0.0
    %726 = vmatprep.subr.mxu0 0.0
    %727 = vmatpush1.xpose.msra.mxu0 0.0
    %728 = vmatprep.subr.mxu0 0.0
    %729 = vmatpush1.xpose.msra.mxu0 0.0
    %730 = vmatprep.subr.mxu0 0.0
    %731 = vmatpush1.xpose.msra.mxu0 0.0
    %732 = vmatprep.subr.mxu0 0.0
    %733 = vmatpush1.xpose.msra.mxu0 0.0
    %734 = vmatprep.subr.mxu0 0.0
    %735 = vmatpush1.xpose.msra.mxu0 0.0
    %736 = vmatprep.subr.mxu0 0.0
    %737 = vmatpush1.xpose.msra.mxu0 0.0
    %738 = vmatprep.subr.mxu0 0.0
    %739 = vmatpush1.xpose.msra.mxu0 0.0
    %740 = vmatprep.subr.mxu0 0.0
    %741 = vmatpush1.xpose.msra.mxu0 0.0
    %742 = vmatprep.subr.mxu0 0.0
    %743 = vmatpush1.xpose.msra.mxu0 0.0
    %744 = vmatprep.subr.mxu0 0.0
    %745 = vmatpush1.xpose.msra.mxu0 0.0
    %746 = vmatprep.subr.mxu0 0.0
    %747 = vmatpush1.xpose.msra.mxu0 0.0
    %748 = vmatprep.subr.mxu0 0.0
    %749 = vmatpush1.xpose.msra.mxu0 0.0
    %750 = vmatprep.subr.mxu0 0.0
    %751 = vmatpush1.xpose.msra.mxu0 0.0
    %752 = vmatprep.subr.mxu0 0.0
    %753 = vmatpush1.xpose.msra.mxu0 0.0
    %754 = vmatprep.subr.mxu0 0.0
    %755 = vmatpush1.xpose.msra.mxu0 0.0
    %756 = vmatprep.subr.mxu0 0.0
    %757 = vmatpush1.xpose.msra.mxu0 0.0
    %758 = vmatprep.subr.mxu0 0.0
    %759 = vmatpush1.xpose.msra.mxu0 0.0
    %760 = vmatprep.subr.mxu0 0.0
    %761 = vmatpush1.xpose.msra.mxu0 0.0
    %762 = vmatprep.subr.mxu0 0.0
    %763 = vmatpush1.xpose.msra.mxu0 0.0
    %764 = vmatprep.mubr.f32.mxu0 0.0
    %765 = vmatmul.mubr.f32.gmra.mrb[0].mxu0 %v696
    %v766 = vpop.f32.mrb[0].mxu0
    %v767 = vadd.f32 0.0, %v766
    %v768 = vpop.f32.mrb[0].mxu0
    %769 = vdwg.mxu0
    %v770 = vsel %vm163, %v235, -inf
    %771 = vmax.xlane.f32.xlu0 %v770
    %v772 = vpop.xlane.xlu0 %771
    %v773 = vsel %vm163, %v311, -inf
    %774 = vmax.xlane.f32.xlu0 %v773
    %v775 = vpop.xlane.xlu0 %774
    %v776 = vsel %vm163, %v387, -inf
    %777 = vmax.xlane.f32.xlu0 %v776
    %v778 = vpop.xlane.xlu0 %777
    %v779 = vsel %vm163, %v463, -inf
    %780 = vmax.xlane.f32.xlu0 %v779
    %v781 = vpop.xlane.xlu0 %780
    %v782 = vsel %vm163, %v539, -inf
    %783 = vmax.xlane.f32.xlu0 %v782
    %v784 = vpop.xlane.xlu0 %783
    %v785 = vsel %vm163, %v615, -inf
    %786 = vmax.xlane.f32.xlu0 %v785
    %v787 = vpop.xlane.xlu0 %786
    %v788 = vsel %vm163, %v691, -inf
    %789 = vmax.xlane.f32.xlu0 %v788
    %v790 = vpop.xlane.xlu0 %789
    %v791 = vsel %vm163, %v767, -inf
    %792 = vmax.xlane.f32.xlu0 %v791
    %v793 = vpop.xlane.xlu0 %792
    %v794 = vsub.f32 %v235, %v772
    %v795 = vsub.f32 %v311, %v775
    %v796 = vsub.f32 %v387, %v778
    %v797 = vsub.f32 %v463, %v781
    %v798 = vsub.f32 %v539, %v784
    %v799 = vsub.f32 %v615, %v787
    %v800 = vsub.f32 %v691, %v790
    %v801 = vsub.f32 %v767, %v793
    %v802 = vmul.f32 %v794, 1.442695
    %v803 = vpow.pop %v802
    %v804 = vmul.f32 %v795, 1.442695
    %v805 = vpow.pop %v804
    %v806 = vmul.f32 %v796, 1.442695
    %v807 = vpow.pop %v806
    %v808 = vmul.f32 %v797, 1.442695
    %v809 = vpow.pop %v808
    %v810 = vmul.f32 %v798, 1.442695
    %v811 = vpow.pop %v810
    %v812 = vmul.f32 %v799, 1.442695
    %v813 = vpow.pop %v812
    %v814 = vmul.f32 %v800, 1.442695
    %v815 = vpow.pop %v814
    %v816 = vmul.f32 %v801, 1.442695
    %v817 = vpow.pop %v816
    %v818 = vsel %vm163, %v803, 0.0
    %819 = vadd.xlane.f32.xlu0 %v818
    %v820 = vpop.xlane.xlu0 %819
    %v821 = vsel %vm163, %v805, 0.0
    %822 = vadd.xlane.f32.xlu0 %v821
    %v823 = vpop.xlane.xlu0 %822
    %v824 = vsel %vm163, %v807, 0.0
    %825 = vadd.xlane.f32.xlu0 %v824
    %v826 = vpop.xlane.xlu0 %825
    %v827 = vsel %vm163, %v809, 0.0
    %828 = vadd.xlane.f32.xlu0 %v827
    %v829 = vpop.xlane.xlu0 %828
    %v830 = vsel %vm163, %v811, 0.0
    %831 = vadd.xlane.f32.xlu0 %v830
    %v832 = vpop.xlane.xlu0 %831
    %v833 = vsel %vm163, %v813, 0.0
    %834 = vadd.xlane.f32.xlu0 %v833
    %v835 = vpop.xlane.xlu0 %834
    %v836 = vsel %vm163, %v815, 0.0
    %837 = vadd.xlane.f32.xlu0 %v836
    %v838 = vpop.xlane.xlu0 %837
    %v839 = vsel %vm163, %v817, 0.0
    %840 = vadd.xlane.f32.xlu0 %v839
    %v841 = vpop.xlane.xlu0 %840
    %v842 = vrcp.pop %v820
    %v843 = vrcp.pop %v823
    %v844 = vrcp.pop %v826
    %v845 = vrcp.pop %v829
    %v846 = vrcp.pop %v832
    %v847 = vrcp.pop %v835
    %v848 = vrcp.pop %v838
    %v849 = vrcp.pop %v841
    %v850 = vmul.f32 %v803, %v842
    %v851 = vmul.f32 %v805, %v843
    %v852 = vmul.f32 %v807, %v844
    %v853 = vmul.f32 %v809, %v845
    %v854 = vmul.f32 %v811, %v846
    %v855 = vmul.f32 %v813, %v847
    %v856 = vmul.f32 %v815, %v848
    %v857 = vmul.f32 %v817, %v849
    %858 = vrot.lane.b32.xlu0 %v139, 64
    %v859 = vpop.permute.xlu0 %858
    %v862 = vsel %vm163, %v850, 0
    %864 = vmatprep.subr.mxu0 0.0
    %865 = vmatpush1.msra.mxu0 %v859
    %866 = vmatprep.subr.mxu0 0.0
    %867 = vmatpush1.msra.mxu0 0.0
    %868 = vmatprep.subr.mxu0 0.0
    %869 = vmatpush1.msra.mxu0 0.0
    %870 = vmatprep.subr.mxu0 0.0
    %871 = vmatpush1.msra.mxu0 0.0
    %872 = vmatprep.subr.mxu0 0.0
    %873 = vmatpush1.msra.mxu0 0.0
    %874 = vmatprep.subr.mxu0 0.0
    %875 = vmatpush1.msra.mxu0 0.0
    %876 = vmatprep.subr.mxu0 0.0
    %877 = vmatpush1.msra.mxu0 0.0
    %878 = vmatprep.subr.mxu0 0.0
    %879 = vmatpush1.msra.mxu0 0.0
    %880 = vmatprep.subr.mxu0 0.0
    %881 = vmatpush1.msra.mxu0 0.0
    %882 = vmatprep.subr.mxu0 0.0
    %883 = vmatpush1.msra.mxu0 0.0
    %884 = vmatprep.subr.mxu0 0.0
    %885 = vmatpush1.msra.mxu0 0.0
    %886 = vmatprep.subr.mxu0 0.0
    %887 = vmatpush1.msra.mxu0 0.0
    %888 = vmatprep.subr.mxu0 0.0
    %889 = vmatpush1.msra.mxu0 0.0
    %890 = vmatprep.subr.mxu0 0.0
    %891 = vmatpush1.msra.mxu0 0.0
    %892 = vmatprep.subr.mxu0 0.0
    %893 = vmatpush1.msra.mxu0 0.0
    %894 = vmatprep.subr.mxu0 0.0
    %895 = vmatpush1.msra.mxu0 0.0
    %896 = vmatprep.subr.mxu0 0.0
    %897 = vmatpush1.msra.mxu0 0.0
    %898 = vmatprep.subr.mxu0 0.0
    %899 = vmatpush1.msra.mxu0 0.0
    %900 = vmatprep.subr.mxu0 0.0
    %901 = vmatpush1.msra.mxu0 0.0
    %902 = vmatprep.subr.mxu0 0.0
    %903 = vmatpush1.msra.mxu0 0.0
    %904 = vmatprep.subr.mxu0 0.0
    %905 = vmatpush1.msra.mxu0 0.0
    %906 = vmatprep.subr.mxu0 0.0
    %907 = vmatpush1.msra.mxu0 0.0
    %908 = vmatprep.subr.mxu0 0.0
    %909 = vmatpush1.msra.mxu0 0.0
    %910 = vmatprep.subr.mxu0 0.0
    %911 = vmatpush1.msra.mxu0 0.0
    %912 = vmatprep.subr.mxu0 0.0
    %913 = vmatpush1.msra.mxu0 0.0
    %914 = vmatprep.subr.mxu0 0.0
    %915 = vmatpush1.msra.mxu0 0.0
    %916 = vmatprep.subr.mxu0 0.0
    %917 = vmatpush1.msra.mxu0 0.0
    %918 = vmatprep.subr.mxu0 0.0
    %919 = vmatpush1.msra.mxu0 0.0
    %920 = vmatprep.subr.mxu0 0.0
    %921 = vmatpush1.msra.mxu0 0.0
    %922 = vmatprep.subr.mxu0 0.0
    %923 = vmatpush1.msra.mxu0 0.0
    %924 = vmatprep.subr.mxu0 0.0
    %925 = vmatpush1.msra.mxu0 0.0
    %926 = vmatprep.subr.mxu0 0.0
    %927 = vmatpush1.msra.mxu0 0.0
    %928 = vmatprep.mubr.f32.mxu0 0.0
    %929 = vmatmul.mubr.f32.gmra.mrb[0].mxu0 %v862
    %v930 = vpop.f32.mrb[0].mxu0
    %v931 = vadd.f32 0.0, %v930
    %v932 = vpop.f32.mrb[0].mxu0
    %933 = vdwg.mxu0
    %934 = vrot.lane.b32.xlu0 %v144, 64
    %v935 = vpop.permute.xlu0 %934
    %v938 = vsel %vm163, %v851, 0
    %940 = vmatprep.subr.mxu0 0.0
    %941 = vmatpush1.msra.mxu0 %v935
    %942 = vmatprep.subr.mxu0 0.0
    %943 = vmatpush1.msra.mxu0 0.0
    %944 = vmatprep.subr.mxu0 0.0
    %945 = vmatpush1.msra.mxu0 0.0
    %946 = vmatprep.subr.mxu0 0.0
    %947 = vmatpush1.msra.mxu0 0.0
    %948 = vmatprep.subr.mxu0 0.0
    %949 = vmatpush1.msra.mxu0 0.0
    %950 = vmatprep.subr.mxu0 0.0
    %951 = vmatpush1.msra.mxu0 0.0
    %952 = vmatprep.subr.mxu0 0.0
    %953 = vmatpush1.msra.mxu0 0.0
    %954 = vmatprep.subr.mxu0 0.0
    %955 = vmatpush1.msra.mxu0 0.0
    %956 = vmatprep.subr.mxu0 0.0
    %957 = vmatpush1.msra.mxu0 0.0
    %958 = vmatprep.subr.mxu0 0.0
    %959 = vmatpush1.msra.mxu0 0.0
    %960 = vmatprep.subr.mxu0 0.0
    %961 = vmatpush1.msra.mxu0 0.0
    %962 = vmatprep.subr.mxu0 0.0
    %963 = vmatpush1.msra.mxu0 0.0
    %964 = vmatprep.subr.mxu0 0.0
    %965 = vmatpush1.msra.mxu0 0.0
    %966 = vmatprep.subr.mxu0 0.0
    %967 = vmatpush1.msra.mxu0 0.0
    %968 = vmatprep.subr.mxu0 0.0
    %969 = vmatpush1.msra.mxu0 0.0
    %970 = vmatprep.subr.mxu0 0.0
    %971 = vmatpush1.msra.mxu0 0.0
    %972 = vmatprep.subr.mxu0 0.0
    %973 = vmatpush1.msra.mxu0 0.0
    %974 = vmatprep.subr.mxu0 0.0
    %975 = vmatpush1.msra.mxu0 0.0
    %976 = vmatprep.subr.mxu0 0.0
    %977 = vmatpush1.msra.mxu0 0.0
    %978 = vmatprep.subr.mxu0 0.0
    %979 = vmatpush1.msra.mxu0 0.0
    %980 = vmatprep.subr.mxu0 0.0
    %981 = vmatpush1.msra.mxu0 0.0
    %982 = vmatprep.subr.mxu0 0.0
    %983 = vmatpush1.msra.mxu0 0.0
    %984 = vmatprep.subr.mxu0 0.0
    %985 = vmatpush1.msra.mxu0 0.0
    %986 = vmatprep.subr.mxu0 0.0
    %987 = vmatpush1.msra.mxu0 0.0
    %988 = vmatprep.subr.mxu0 0.0
    %989 = vmatpush1.msra.mxu0 0.0
    %990 = vmatprep.subr.mxu0 0.0
    %991 = vmatpush1.msra.mxu0 0.0
    %992 = vmatprep.subr.mxu0 0.0
    %993 = vmatpush1.msra.mxu0 0.0
    %994 = vmatprep.subr.mxu0 0.0
    %995 = vmatpush1.msra.mxu0 0.0
    %996 = vmatprep.subr.mxu0 0.0
    %997 = vmatpush1.msra.mxu0 0.0
    %998 = vmatprep.subr.mxu0 0.0
    %999 = vmatpush1.msra.mxu0 0.0
    %1000 = vmatprep.subr.mxu0 0.0
    %1001 = vmatpush1.msra.mxu0 0.0
    %1002 = vmatprep.subr.mxu0 0.0
    %1003 = vmatpush1.msra.mxu0 0.0
    %1004 = vmatprep.mubr.f32.mxu0 0.0
    %1005 = vmatmul.mubr.f32.gmra.mrb[0].mxu0 %v938
    %v1006 = vpop.f32.mrb[0].mxu0
    %v1007 = vadd.f32 0.0, %v1006
    %v1008 = vpop.f32.mrb[0].mxu0
    %1009 = vdwg.mxu0
    %1010 = vrot.lane.b32.xlu0 %v150, 64
    %v1011 = vpop.permute.xlu0 %1010
    %v1014 = vsel %vm163, %v852, 0
    %1016 = vmatprep.subr.mxu0 0.0
    %1017 = vmatpush1.msra.mxu0 %v1011
    %1018 = vmatprep.subr.mxu0 0.0
    %1019 = vmatpush1.msra.mxu0 0.0
    %1020 = vmatprep.subr.mxu0 0.0
    %1021 = vmatpush1.msra.mxu0 0.0
    %1022 = vmatprep.subr.mxu0 0.0
    %1023 = vmatpush1.msra.mxu0 0.0
    %1024 = vmatprep.subr.mxu0 0.0
    %1025 = vmatpush1.msra.mxu0 0.0
    %1026 = vmatprep.subr.mxu0 0.0
    %1027 = vmatpush1.msra.mxu0 0.0
    %1028 = vmatprep.subr.mxu0 0.0
    %1029 = vmatpush1.msra.mxu0 0.0
    %1030 = vmatprep.subr.mxu0 0.0
    %1031 = vmatpush1.msra.mxu0 0.0
    %1032 = vmatprep.subr.mxu0 0.0
    %1033 = vmatpush1.msra.mxu0 0.0
    %1034 = vmatprep.subr.mxu0 0.0
    %1035 = vmatpush1.msra.mxu0 0.0
    %1036 = vmatprep.subr.mxu0 0.0
    %1037 = vmatpush1.msra.mxu0 0.0
    %1038 = vmatprep.subr.mxu0 0.0
    %1039 = vmatpush1.msra.mxu0 0.0
    %1040 = vmatprep.subr.mxu0 0.0
    %1041 = vmatpush1.msra.mxu0 0.0
    %1042 = vmatprep.subr.mxu0 0.0
    %1043 = vmatpush1.msra.mxu0 0.0
    %1044 = vmatprep.subr.mxu0 0.0
    %1045 = vmatpush1.msra.mxu0 0.0
    %1046 = vmatprep.subr.mxu0 0.0
    %1047 = vmatpush1.msra.mxu0 0.0
    %1048 = vmatprep.subr.mxu0 0.0
    %1049 = vmatpush1.msra.mxu0 0.0
    %1050 = vmatprep.subr.mxu0 0.0
    %1051 = vmatpush1.msra.mxu0 0.0
    %1052 = vmatprep.subr.mxu0 0.0
    %1053 = vmatpush1.msra.mxu0 0.0
    %1054 = vmatprep.subr.mxu0 0.0
    %1055 = vmatpush1.msra.mxu0 0.0
    %1056 = vmatprep.subr.mxu0 0.0
    %1057 = vmatpush1.msra.mxu0 0.0
    %1058 = vmatprep.subr.mxu0 0.0
    %1059 = vmatpush1.msra.mxu0 0.0
    %1060 = vmatprep.subr.mxu0 0.0
    %1061 = vmatpush1.msra.mxu0 0.0
    %1062 = vmatprep.subr.mxu0 0.0
    %1063 = vmatpush1.msra.mxu0 0.0
    %1064 = vmatprep.subr.mxu0 0.0
    %1065 = vmatpush1.msra.mxu0 0.0
    %1066 = vmatprep.subr.mxu0 0.0
    %1067 = vmatpush1.msra.mxu0 0.0
    %1068 = vmatprep.subr.mxu0 0.0
    %1069 = vmatpush1.msra.mxu0 0.0
    %1070 = vmatprep.subr.mxu0 0.0
    %1071 = vmatpush1.msra.mxu0 0.0
    %1072 = vmatprep.subr.mxu0 0.0
    %1073 = vmatpush1.msra.mxu0 0.0
    %1074 = vmatprep.subr.mxu0 0.0
    %1075 = vmatpush1.msra.mxu0 0.0
    %1076 = vmatprep.subr.mxu0 0.0
    %1077 = vmatpush1.msra.mxu0 0.0
    %1078 = vmatprep.subr.mxu0 0.0
    %1079 = vmatpush1.msra.mxu0 0.0
    %1080 = vmatprep.mubr.f32.mxu0 0.0
    %1081 = vmatmul.mubr.f32.gmra.mrb[0].mxu0 %v1014
    %v1082 = vpop.f32.mrb[0].mxu0
    %v1083 = vadd.f32 0.0, %v1082
    %v1084 = vpop.f32.mrb[0].mxu0
    %1085 = vdwg.mxu0
    %1086 = vrot.lane.b32.xlu0 %v152, 64
    %v1087 = vpop.permute.xlu0 %1086
    %v1090 = vsel %vm163, %v853, 0
    %1092 = vmatprep.subr.mxu0 0.0
    %1093 = vmatpush1.msra.mxu0 %v1087
    %1094 = vmatprep.subr.mxu0 0.0
    %1095 = vmatpush1.msra.mxu0 0.0
    %1096 = vmatprep.subr.mxu0 0.0
    %1097 = vmatpush1.msra.mxu0 0.0
    %1098 = vmatprep.subr.mxu0 0.0
    %1099 = vmatpush1.msra.mxu0 0.0
    %1100 = vmatprep.subr.mxu0 0.0
    %1101 = vmatpush1.msra.mxu0 0.0
    %1102 = vmatprep.subr.mxu0 0.0
    %1103 = vmatpush1.msra.mxu0 0.0
    %1104 = vmatprep.subr.mxu0 0.0
    %1105 = vmatpush1.msra.mxu0 0.0
    %1106 = vmatprep.subr.mxu0 0.0
    %1107 = vmatpush1.msra.mxu0 0.0
    %1108 = vmatprep.subr.mxu0 0.0
    %1109 = vmatpush1.msra.mxu0 0.0
    %1110 = vmatprep.subr.mxu0 0.0
    %1111 = vmatpush1.msra.mxu0 0.0
    %1112 = vmatprep.subr.mxu0 0.0
    %1113 = vmatpush1.msra.mxu0 0.0
    %1114 = vmatprep.subr.mxu0 0.0
    %1115 = vmatpush1.msra.mxu0 0.0
    %1116 = vmatprep.subr.mxu0 0.0
    %1117 = vmatpush1.msra.mxu0 0.0
    %1118 = vmatprep.subr.mxu0 0.0
    %1119 = vmatpush1.msra.mxu0 0.0
    %1120 = vmatprep.subr.mxu0 0.0
    %1121 = vmatpush1.msra.mxu0 0.0
    %1122 = vmatprep.subr.mxu0 0.0
    %1123 = vmatpush1.msra.mxu0 0.0
    %1124 = vmatprep.subr.mxu0 0.0
    %1125 = vmatpush1.msra.mxu0 0.0
    %1126 = vmatprep.subr.mxu0 0.0
    %1127 = vmatpush1.msra.mxu0 0.0
    %1128 = vmatprep.subr.mxu0 0.0
    %1129 = vmatpush1.msra.mxu0 0.0
    %1130 = vmatprep.subr.mxu0 0.0
    %1131 = vmatpush1.msra.mxu0 0.0
    %1132 = vmatprep.subr.mxu0 0.0
    %1133 = vmatpush1.msra.mxu0 0.0
    %1134 = vmatprep.subr.mxu0 0.0
    %1135 = vmatpush1.msra.mxu0 0.0
    %1136 = vmatprep.subr.mxu0 0.0
    %1137 = vmatpush1.msra.mxu0 0.0
    %1138 = vmatprep.subr.mxu0 0.0
    %1139 = vmatpush1.msra.mxu0 0.0
    %1140 = vmatprep.subr.mxu0 0.0
    %1141 = vmatpush1.msra.mxu0 0.0
    %1142 = vmatprep.subr.mxu0 0.0
    %1143 = vmatpush1.msra.mxu0 0.0
    %1144 = vmatprep.subr.mxu0 0.0
    %1145 = vmatpush1.msra.mxu0 0.0
    %1146 = vmatprep.subr.mxu0 0.0
    %1147 = vmatpush1.msra.mxu0 0.0
    %1148 = vmatprep.subr.mxu0 0.0
    %1149 = vmatpush1.msra.mxu0 0.0
    %1150 = vmatprep.subr.mxu0 0.0
    %1151 = vmatpush1.msra.mxu0 0.0
    %1152 = vmatprep.subr.mxu0 0.0
    %1153 = vmatpush1.msra.mxu0 0.0
    %1154 = vmatprep.subr.mxu0 0.0
    %1155 = vmatpush1.msra.mxu0 0.0
    %1156 = vmatprep.mubr.f32.mxu0 0.0
    %1157 = vmatmul.mubr.f32.gmra.mrb[0].mxu0 %v1090
    %v1158 = vpop.f32.mrb[0].mxu0
    %v1159 = vadd.f32 0.0, %v1158
    %v1160 = vpop.f32.mrb[0].mxu0
    %1161 = vdwg.mxu0
    %1162 = vrot.lane.b32.xlu0 %v154, 64
    %v1163 = vpop.permute.xlu0 %1162
    %v1166 = vsel %vm163, %v854, 0
    %1168 = vmatprep.subr.mxu0 0.0
    %1169 = vmatpush1.msra.mxu0 %v1163
    %1170 = vmatprep.subr.mxu0 0.0
    %1171 = vmatpush1.msra.mxu0 0.0
    %1172 = vmatprep.subr.mxu0 0.0
    %1173 = vmatpush1.msra.mxu0 0.0
    %1174 = vmatprep.subr.mxu0 0.0
    %1175 = vmatpush1.msra.mxu0 0.0
    %1176 = vmatprep.subr.mxu0 0.0
    %1177 = vmatpush1.msra.mxu0 0.0
    %1178 = vmatprep.subr.mxu0 0.0
    %1179 = vmatpush1.msra.mxu0 0.0
    %1180 = vmatprep.subr.mxu0 0.0
    %1181 = vmatpush1.msra.mxu0 0.0
    %1182 = vmatprep.subr.mxu0 0.0
    %1183 = vmatpush1.msra.mxu0 0.0
    %1184 = vmatprep.subr.mxu0 0.0
    %1185 = vmatpush1.msra.mxu0 0.0
    %1186 = vmatprep.subr.mxu0 0.0
    %1187 = vmatpush1.msra.mxu0 0.0
    %1188 = vmatprep.subr.mxu0 0.0
    %1189 = vmatpush1.msra.mxu0 0.0
    %1190 = vmatprep.subr.mxu0 0.0
    %1191 = vmatpush1.msra.mxu0 0.0
    %1192 = vmatprep.subr.mxu0 0.0
    %1193 = vmatpush1.msra.mxu0 0.0
    %1194 = vmatprep.subr.mxu0 0.0
    %1195 = vmatpush1.msra.mxu0 0.0
    %1196 = vmatprep.subr.mxu0 0.0
    %1197 = vmatpush1.msra.mxu0 0.0
    %1198 = vmatprep.subr.mxu0 0.0
    %1199 = vmatpush1.msra.mxu0 0.0
    %1200 = vmatprep.subr.mxu0 0.0
    %1201 = vmatpush1.msra.mxu0 0.0
    %1202 = vmatprep.subr.mxu0 0.0
    %1203 = vmatpush1.msra.mxu0 0.0
    %1204 = vmatprep.subr.mxu0 0.0
    %1205 = vmatpush1.msra.mxu0 0.0
    %1206 = vmatprep.subr.mxu0 0.0
    %1207 = vmatpush1.msra.mxu0 0.0
    %1208 = vmatprep.subr.mxu0 0.0
    %1209 = vmatpush1.msra.mxu0 0.0
    %1210 = vmatprep.subr.mxu0 0.0
    %1211 = vmatpush1.msra.mxu0 0.0
    %1212 = vmatprep.subr.mxu0 0.0
    %1213 = vmatpush1.msra.mxu0 0.0
    %1214 = vmatprep.subr.mxu0 0.0
    %1215 = vmatpush1.msra.mxu0 0.0
    %1216 = vmatprep.subr.mxu0 0.0
    %1217 = vmatpush1.msra.mxu0 0.0
    %1218 = vmatprep.subr.mxu0 0.0
    %1219 = vmatpush1.msra.mxu0 0.0
    %1220 = vmatprep.subr.mxu0 0.0
    %1221 = vmatpush1.msra.mxu0 0.0
    %1222 = vmatprep.subr.mxu0 0.0
    %1223 = vmatpush1.msra.mxu0 0.0
    %1224 = vmatprep.subr.mxu0 0.0
    %1225 = vmatpush1.msra.mxu0 0.0
    %1226 = vmatprep.subr.mxu0 0.0
    %1227 = vmatpush1.msra.mxu0 0.0
    %1228 = vmatprep.subr.mxu0 0.0
    %1229 = vmatpush1.msra.mxu0 0.0
    %1230 = vmatprep.subr.mxu0 0.0
    %1231 = vmatpush1.msra.mxu0 0.0
    %1232 = vmatprep.mubr.f32.mxu0 0.0
    %1233 = vmatmul.mubr.f32.gmra.mrb[0].mxu0 %v1166
    %v1234 = vpop.f32.mrb[0].mxu0
    %v1235 = vadd.f32 0.0, %v1234
    %v1236 = vpop.f32.mrb[0].mxu0
    %1237 = vdwg.mxu0
    %1238 = vrot.lane.b32.xlu0 %v156, 64
    %v1239 = vpop.permute.xlu0 %1238
    %v1242 = vsel %vm163, %v855, 0
    %1244 = vmatprep.subr.mxu0 0.0
    %1245 = vmatpush1.msra.mxu0 %v1239
    %1246 = vmatprep.subr.mxu0 0.0
    %1247 = vmatpush1.msra.mxu0 0.0
    %1248 = vmatprep.subr.mxu0 0.0
    %1249 = vmatpush1.msra.mxu0 0.0
    %1250 = vmatprep.subr.mxu0 0.0
    %1251 = vmatpush1.msra.mxu0 0.0
    %1252 = vmatprep.subr.mxu0 0.0
    %1253 = vmatpush1.msra.mxu0 0.0
    %1254 = vmatprep.subr.mxu0 0.0
    %1255 = vmatpush1.msra.mxu0 0.0
    %1256 = vmatprep.subr.mxu0 0.0
    %1257 = vmatpush1.msra.mxu0 0.0
    %1258 = vmatprep.subr.mxu0 0.0
    %1259 = vmatpush1.msra.mxu0 0.0
    %1260 = vmatprep.subr.mxu0 0.0
    %1261 = vmatpush1.msra.mxu0 0.0
    %1262 = vmatprep.subr.mxu0 0.0
    %1263 = vmatpush1.msra.mxu0 0.0
    %1264 = vmatprep.subr.mxu0 0.0
    %1265 = vmatpush1.msra.mxu0 0.0
    %1266 = vmatprep.subr.mxu0 0.0
    %1267 = vmatpush1.msra.mxu0 0.0
    %1268 = vmatprep.subr.mxu0 0.0
    %1269 = vmatpush1.msra.mxu0 0.0
    %1270 = vmatprep.subr.mxu0 0.0
    %1271 = vmatpush1.msra.mxu0 0.0
    %1272 = vmatprep.subr.mxu0 0.0
    %1273 = vmatpush1.msra.mxu0 0.0
    %1274 = vmatprep.subr.mxu0 0.0
    %1275 = vmatpush1.msra.mxu0 0.0
    %1276 = vmatprep.subr.mxu0 0.0
    %1277 = vmatpush1.msra.mxu0 0.0
    %1278 = vmatprep.subr.mxu0 0.0
    %1279 = vmatpush1.msra.mxu0 0.0
    %1280 = vmatprep.subr.mxu0 0.0
    %1281 = vmatpush1.msra.mxu0 0.0
    %1282 = vmatprep.subr.mxu0 0.0
    %1283 = vmatpush1.msra.mxu0 0.0
    %1284 = vmatprep.subr.mxu0 0.0
    %1285 = vmatpush1.msra.mxu0 0.0
    %1286 = vmatprep.subr.mxu0 0.0
    %1287 = vmatpush1.msra.mxu0 0.0
    %1288 = vmatprep.subr.mxu0 0.0
    %1289 = vmatpush1.msra.mxu0 0.0
    %1290 = vmatprep.subr.mxu0 0.0
    %1291 = vmatpush1.msra.mxu0 0.0
    %1292 = vmatprep.subr.mxu0 0.0
    %1293 = vmatpush1.msra.mxu0 0.0
    %1294 = vmatprep.subr.mxu0 0.0
    %1295 = vmatpush1.msra.mxu0 0.0
    %1296 = vmatprep.subr.mxu0 0.0
    %1297 = vmatpush1.msra.mxu0 0.0
    %1298 = vmatprep.subr.mxu0 0.0
    %1299 = vmatpush1.msra.mxu0 0.0
    %1300 = vmatprep.subr.mxu0 0.0
    %1301 = vmatpush1.msra.mxu0 0.0
    %1302 = vmatprep.subr.mxu0 0.0
    %1303 = vmatpush1.msra.mxu0 0.0
    %1304 = vmatprep.subr.mxu0 0.0
    %1305 = vmatpush1.msra.mxu0 0.0
    %1306 = vmatprep.subr.mxu0 0.0
    %1307 = vmatpush1.msra.mxu0 0.0
    %1308 = vmatprep.mubr.f32.mxu0 0.0
    %1309 = vmatmul.mubr.f32.gmra.mrb[0].mxu0 %v1242
    %v1310 = vpop.f32.mrb[0].mxu0
    %v1311 = vadd.f32 0.0, %v1310
    %v1312 = vpop.f32.mrb[0].mxu0
    %1313 = vdwg.mxu0
    %1314 = vrot.lane.b32.xlu0 %v158, 64
    %v1315 = vpop.permute.xlu0 %1314
    %v1318 = vsel %vm163, %v856, 0
    %1320 = vmatprep.subr.mxu0 0.0
    %1321 = vmatpush1.msra.mxu0 %v1315
    %1322 = vmatprep.subr.mxu0 0.0
    %1323 = vmatpush1.msra.mxu0 0.0
    %1324 = vmatprep.subr.mxu0 0.0
    %1325 = vmatpush1.msra.mxu0 0.0
    %1326 = vmatprep.subr.mxu0 0.0
    %1327 = vmatpush1.msra.mxu0 0.0
    %1328 = vmatprep.subr.mxu0 0.0
    %1329 = vmatpush1.msra.mxu0 0.0
    %1330 = vmatprep.subr.mxu0 0.0
    %1331 = vmatpush1.msra.mxu0 0.0
    %1332 = vmatprep.subr.mxu0 0.0
    %1333 = vmatpush1.msra.mxu0 0.0
    %1334 = vmatprep.subr.mxu0 0.0
    %1335 = vmatpush1.msra.mxu0 0.0
    %1336 = vmatprep.subr.mxu0 0.0
    %1337 = vmatpush1.msra.mxu0 0.0
    %1338 = vmatprep.subr.mxu0 0.0
    %1339 = vmatpush1.msra.mxu0 0.0
    %1340 = vmatprep.subr.mxu0 0.0
    %1341 = vmatpush1.msra.mxu0 0.0
    %1342 = vmatprep.subr.mxu0 0.0
    %1343 = vmatpush1.msra.mxu0 0.0
    %1344 = vmatprep.subr.mxu0 0.0
    %1345 = vmatpush1.msra.mxu0 0.0
    %1346 = vmatprep.subr.mxu0 0.0
    %1347 = vmatpush1.msra.mxu0 0.0
    %1348 = vmatprep.subr.mxu0 0.0
    %1349 = vmatpush1.msra.mxu0 0.0
    %1350 = vmatprep.subr.mxu0 0.0
    %1351 = vmatpush1.msra.mxu0 0.0
    %1352 = vmatprep.subr.mxu0 0.0
    %1353 = vmatpush1.msra.mxu0 0.0
    %1354 = vmatprep.subr.mxu0 0.0
    %1355 = vmatpush1.msra.mxu0 0.0
    %1356 = vmatprep.subr.mxu0 0.0
    %1357 = vmatpush1.msra.mxu0 0.0
    %1358 = vmatprep.subr.mxu0 0.0
    %1359 = vmatpush1.msra.mxu0 0.0
    %1360 = vmatprep.subr.mxu0 0.0
    %1361 = vmatpush1.msra.mxu0 0.0
    %1362 = vmatprep.subr.mxu0 0.0
    %1363 = vmatpush1.msra.mxu0 0.0
    %1364 = vmatprep.subr.mxu0 0.0
    %1365 = vmatpush1.msra.mxu0 0.0
    %1366 = vmatprep.subr.mxu0 0.0
    %1367 = vmatpush1.msra.mxu0 0.0
    %1368 = vmatprep.subr.mxu0 0.0
    %1369 = vmatpush1.msra.mxu0 0.0
    %1370 = vmatprep.subr.mxu0 0.0
    %1371 = vmatpush1.msra.mxu0 0.0
    %1372 = vmatprep.subr.mxu0 0.0
    %1373 = vmatpush1.msra.mxu0 0.0
    %1374 = vmatprep.subr.mxu0 0.0
    %1375 = vmatpush1.msra.mxu0 0.0
    %1376 = vmatprep.subr.mxu0 0.0
    %1377 = vmatpush1.msra.mxu0 0.0
    %1378 = vmatprep.subr.mxu0 0.0
    %1379 = vmatpush1.msra.mxu0 0.0
    %1380 = vmatprep.subr.mxu0 0.0
    %1381 = vmatpush1.msra.mxu0 0.0
    %1382 = vmatprep.subr.mxu0 0.0
    %1383 = vmatpush1.msra.mxu0 0.0
    %1384 = vmatprep.mubr.f32.mxu0 0.0
    %1385 = vmatmul.mubr.f32.gmra.mrb[0].mxu0 %v1318
    %v1386 = vpop.f32.mrb[0].mxu0
    %v1387 = vadd.f32 0.0, %v1386
    %v1388 = vpop.f32.mrb[0].mxu0
    %1389 = vdwg.mxu0
    %1390 = vrot.lane.b32.xlu0 %v160, 64
    %v1391 = vpop.permute.xlu0 %1390
    %v1394 = vsel %vm163, %v857, 0
    %1396 = vmatprep.subr.mxu0 0.0
    %1397 = vmatpush1.msra.mxu0 %v1391
    %1398 = vmatprep.subr.mxu0 0.0
    %1399 = vmatpush1.msra.mxu0 0.0
    %1400 = vmatprep.subr.mxu0 0.0
    %1401 = vmatpush1.msra.mxu0 0.0
    %1402 = vmatprep.subr.mxu0 0.0
    %1403 = vmatpush1.msra.mxu0 0.0
    %1404 = vmatprep.subr.mxu0 0.0
    %1405 = vmatpush1.msra.mxu0 0.0
    %1406 = vmatprep.subr.mxu0 0.0
    %1407 = vmatpush1.msra.mxu0 0.0
    %1408 = vmatprep.subr.mxu0 0.0
    %1409 = vmatpush1.msra.mxu0 0.0
    %1410 = vmatprep.subr.mxu0 0.0
    %1411 = vmatpush1.msra.mxu0 0.0
    %1412 = vmatprep.subr.mxu0 0.0
    %1413 = vmatpush1.msra.mxu0 0.0
    %1414 = vmatprep.subr.mxu0 0.0
    %1415 = vmatpush1.msra.mxu0 0.0
    %1416 = vmatprep.subr.mxu0 0.0
    %1417 = vmatpush1.msra.mxu0 0.0
    %1418 = vmatprep.subr.mxu0 0.0
    %1419 = vmatpush1.msra.mxu0 0.0
    %1420 = vmatprep.subr.mxu0 0.0
    %1421 = vmatpush1.msra.mxu0 0.0
    %1422 = vmatprep.subr.mxu0 0.0
    %1423 = vmatpush1.msra.mxu0 0.0
    %1424 = vmatprep.subr.mxu0 0.0
    %1425 = vmatpush1.msra.mxu0 0.0
    %1426 = vmatprep.subr.mxu0 0.0
    %1427 = vmatpush1.msra.mxu0 0.0
    %1428 = vmatprep.subr.mxu0 0.0
    %1429 = vmatpush1.msra.mxu0 0.0
    %1430 = vmatprep.subr.mxu0 0.0
    %1431 = vmatpush1.msra.mxu0 0.0
    %1432 = vmatprep.subr.mxu0 0.0
    %1433 = vmatpush1.msra.mxu0 0.0
    %1434 = vmatprep.subr.mxu0 0.0
    %1435 = vmatpush1.msra.mxu0 0.0
    %1436 = vmatprep.subr.mxu0 0.0
    %1437 = vmatpush1.msra.mxu0 0.0
    %1438 = vmatprep.subr.mxu0 0.0
    %1439 = vmatpush1.msra.mxu0 0.0
    %1440 = vmatprep.subr.mxu0 0.0
    %1441 = vmatpush1.msra.mxu0 0.0
    %1442 = vmatprep.subr.mxu0 0.0
    %1443 = vmatpush1.msra.mxu0 0.0
    %1444 = vmatprep.subr.mxu0 0.0
    %1445 = vmatpush1.msra.mxu0 0.0
    %1446 = vmatprep.subr.mxu0 0.0
    %1447 = vmatpush1.msra.mxu0 0.0
    %1448 = vmatprep.subr.mxu0 0.0
    %1449 = vmatpush1.msra.mxu0 0.0
    %1450 = vmatprep.subr.mxu0 0.0
    %1451 = vmatpush1.msra.mxu0 0.0
    %1452 = vmatprep.subr.mxu0 0.0
    %1453 = vmatpush1.msra.mxu0 0.0
    %1454 = vmatprep.subr.mxu0 0.0
    %1455 = vmatpush1.msra.mxu0 0.0
    %1456 = vmatprep.subr.mxu0 0.0
    %1457 = vmatpush1.msra.mxu0 0.0
    %1458 = vmatprep.subr.mxu0 0.0
    %1459 = vmatpush1.msra.mxu0 0.0
    %1460 = vmatprep.mubr.f32.mxu0 0.0
    %1461 = vmatmul.mubr.f32.gmra.mrb[0].mxu0 %v1394
    %v1462 = vpop.f32.mrb[0].mxu0
    %v1463 = vadd.f32 0.0, %v1462
    %v1464 = vpop.f32.mrb[0].mxu0
    %1465 = vdwg.mxu0
    %1466 = vst.msk [vmem:[#allocation2] sm:$0xff] %vm163, %v931
    %1467 = vst.msk [vmem:[#allocation2 + $0x8] sm:$0xff] %vm163, %v1007
    %1470 = vrot.lane.b32.xlu0 %v1083, 8
    %v1471 = vpop.permute.xlu0 %1470
    %1472 = vrot.lane.b32.xlu0 %v1159, 8
    %v1473 = vpop.permute.xlu0 %1472
    %vm1476 = vcmask 130112
    %1477 = vst.msk [vmem:[#allocation2] sm:$0xff] %vm1476, %v1471
    %1478 = vst.msk [vmem:[#allocation2 + $0x8] sm:$0xff] %vm1476, %v1473
    %1481 = vrot.lane.b32.xlu0 %v1235, 16
    %v1482 = vpop.permute.xlu0 %1481
    %1483 = vrot.lane.b32.xlu0 %v1311, 16
    %v1484 = vpop.permute.xlu0 %1483
    %vm1487 = vcmask 195712
    %1488 = vst.msk [vmem:[#allocation2] sm:$0xff] %vm1487, %v1482
    %1489 = vst.msk [vmem:[#allocation2 + $0x8] sm:$0xff] %vm1487, %v1484
    %1492 = vrot.lane.b32.xlu0 %v1387, 24
    %v1493 = vpop.permute.xlu0 %1492
    %1494 = vrot.lane.b32.xlu0 %v1463, 24
    %v1495 = vpop.permute.xlu0 %1494
    %vm1498 = vcmask 261312
    %1499 = vst.msk [vmem:[#allocation2] sm:$0xff] %vm1498, %v1493
    %1500 = vst.msk [vmem:[#allocation2 + $0x8] sm:$0xff] %vm1498, %v1495
    %v1501 = vld [vmem:[#allocation2] sm:$0xff]
    %v1502 = vld [vmem:[#allocation2 + $0x8] sm:$0xff]
    %v1503 = vld [vmem:[#allocation8] sm:$0xff]
    %v1504 = vld [vmem:[#allocation8 + $0x8] sm:$0xff]
    %v1505 = vld [vmem:[#allocation8 + $0x10] sm:$0xff]
    %v1506 = vld [vmem:[#allocation8 + $0x18] sm:$0xff]
    %v1507 = vld [vmem:[%s3] sm:$0x1]
    %v1509 = vlaneseq
    %v1510 = vshrl.u32 %v1509, 7
    %v1511 = vsub.s32 0, %v1510
    %v1512 = vrot.slane %v1507, %v1511
    %v1515 = vsel %vm65, %v1501, 0
    %v1518 = vsel %vm65, %v1502, 0
    %1520 = vmatprep.subr.mxu0 0.0
    %1521 = vmatpush1.msra.mxu0 %v1503
    %1522 = vmatprep.subr.mxu0 0.0
    %1523 = vmatpush1.msra.mxu0 %v1504
    %1524 = vmatprep.subr.mxu0 0.0
    %1525 = vmatpush1.msra.mxu0 %v1505
    %1526 = vmatprep.subr.mxu0 0.0
    %1527 = vmatpush1.msra.mxu0 %v1506
    %1528 = vmatprep.subr.mxu0 0.0
    %1529 = vmatpush1.msra.mxu0 0.0
    %1530 = vmatprep.subr.mxu0 0.0
    %1531 = vmatpush1.msra.mxu0 0.0
    %1532 = vmatprep.subr.mxu0 0.0
    %1533 = vmatpush1.msra.mxu0 0.0
    %1534 = vmatprep.subr.mxu0 0.0
    %1535 = vmatpush1.msra.mxu0 0.0
    %1536 = vmatprep.subr.mxu0 0.0
    %1537 = vmatpush1.msra.mxu0 0.0
    %1538 = vmatprep.subr.mxu0 0.0
    %1539 = vmatpush1.msra.mxu0 0.0
    %1540 = vmatprep.subr.mxu0 0.0
    %1541 = vmatpush1.msra.mxu0 0.0
    %1542 = vmatprep.subr.mxu0 0.0
    %1543 = vmatpush1.msra.mxu0 0.0
    %1544 = vmatprep.subr.mxu0 0.0
    %1545 = vmatpush1.msra.mxu0 0.0
    %1546 = vmatprep.subr.mxu0 0.0
    %1547 = vmatpush1.msra.mxu0 0.0
    %1548 = vmatprep.subr.mxu0 0.0
    %1549 = vmatpush1.msra.mxu0 0.0
    %1550 = vmatprep.subr.mxu0 0.0
    %1551 = vmatpush1.msra.mxu0 0.0
    %1552 = vmatprep.subr.mxu0 0.0
    %1553 = vmatpush1.msra.mxu0 0.0
    %1554 = vmatprep.subr.mxu0 0.0
    %1555 = vmatpush1.msra.mxu0 0.0
    %1556 = vmatprep.subr.mxu0 0.0
    %1557 = vmatpush1.msra.mxu0 0.0
    %1558 = vmatprep.subr.mxu0 0.0
    %1559 = vmatpush1.msra.mxu0 0.0
    %1560 = vmatprep.subr.mxu0 0.0
    %1561 = vmatpush1.msra.mxu0 0.0
    %1562 = vmatprep.subr.mxu0 0.0
    %1563 = vmatpush1.msra.mxu0 0.0
    %1564 = vmatprep.subr.mxu0 0.0
    %1565 = vmatpush1.msra.mxu0 0.0
    %1566 = vmatprep.subr.mxu0 0.0
    %1567 = vmatpush1.msra.mxu0 0.0
    %1568 = vmatprep.subr.mxu0 0.0
    %1569 = vmatpush1.msra.mxu0 0.0
    %1570 = vmatprep.subr.mxu0 0.0
    %1571 = vmatpush1.msra.mxu0 0.0
    %1572 = vmatprep.subr.mxu0 0.0
    %1573 = vmatpush1.msra.mxu0 0.0
    %1574 = vmatprep.subr.mxu0 0.0
    %1575 = vmatpush1.msra.mxu0 0.0
    %1576 = vmatprep.subr.mxu0 0.0
    %1577 = vmatpush1.msra.mxu0 0.0
    %1578 = vmatprep.subr.mxu0 0.0
    %1579 = vmatpush1.msra.mxu0 0.0
    %1580 = vmatprep.subr.mxu0 0.0
    %1581 = vmatpush1.msra.mxu0 0.0
    %1582 = vmatprep.subr.mxu0 0.0
    %1583 = vmatpush1.msra.mxu0 0.0
    %1584 = vmatprep.mubr.f32.mxu0 0.0
    %1585 = vmatmul.mubr.f32.gmra.mrb[0].mxu0 %v1515
    %v1586 = vpop.f32.mrb[0].mxu0
    %v1587 = vadd.f32 %v1512, %v1586
    %v1588 = vpop.f32.mrb[0].mxu0
    %1589 = vmatprep.mubr.f32.mxu0 0.0
    %1590 = vmatmul.mubr.f32.gmra.mrb[0].mxu0 %v1518
    %v1591 = vpop.f32.mrb[0].mxu0
    %v1592 = vadd.f32 %v1512, %v1591
    %v1593 = vpop.f32.mrb[0].mxu0
    %1594 = vdwg.mxu0
    %1595 = vst.msk [vmem:[#allocation9] sm:$0xff] %vm65, %v1587
    %1596 = vst.msk [vmem:[#allocation9 + $0x8] sm:$0xff] %vm65, %v1592
    // Predicated region
    $region30: #{tpu_custom_call.1} parent=1 // pred_check
      _
    $region31: #{tpu_custom_call.1} parent=1 // pred_check_branch
      %1598 = sbr.rel (0) target = $region33
    $region32: #{tpu_custom_call.1} parent=1 // pred_region
      %s1600 = ssub.s32 256, 256
      %1601 = vsyncadd [#allocation5], %s1600
      %s1602 = sshll.u32 [#allocation9], 4
      %s1603 = int_to_ptr.vmem [resolvable:$true] %s1602
      %1608 = dma.vmem_to_hbm [thread:$0]  %s1603, 256, %s4, [#allocation5], 128, 128, 8
    $region33: #{tpu_custom_call.1} parent=1 // pred_fallthru
      _
    // Predicated region
    $region34: #{tpu_custom_call.1} parent=1 // pred_check
      _
    $region35: #{tpu_custom_call.1} parent=1 // pred_check_branch
      %1610 = sbr.rel (0) target = $region37
    $region36: #{tpu_custom_call.1} parent=1 // pred_region
      %1611 = dma.done [#allocation5], 256
    $region37: #{tpu_custom_call.1} parent=1 // pred_fallthru
      _
    %1612 = vsyncpa [#allocation4], 1
    %1613 = vsyncpa [#allocation7], 1
    %1614 = vsyncpa [#allocation5], 1

</llo_original>
